<compile_context>
chip_gen: v7x
topology: tpu7x:2x2x1
jax: 0.10.0
libtpu: 0.0.40
codegen_flags: <defaults>
</compile_context>

<pallas_src>
import math
import jax
import jax.numpy as jnp
from jax import lax
from jax.experimental import pallas as pl
from jax.experimental.pallas import tpu as pltpu

# ----------------------------- config ---------------------------------------
B = 2           # batch
L = 8           # sequence length
D = 32          # embedding_dim
H = 4           # num_attention_heads
HD = D // H     # head dim
F = 64          # ffn_embedding_dim
G = B * H       # (batch, head) leading dim for the attention core
N = B * L       # flattened token count
LN_EPS = 1e-5


def _layernorm(v, g, b):
    mu = jnp.mean(v, axis=-1, keepdims=True)
    var = jnp.mean((v - mu) * (v - mu), axis=-1, keepdims=True)
    return (v - mu) * lax.rsqrt(var + LN_EPS) * g + b


def _gelu_exact(v):
    # matches torch.nn.functional.gelu (erf formulation)
    return 0.5 * v * (1.0 + lax.erf(v * (1.0 / math.sqrt(2.0))))


# ----------------------------- kernel ---------------------------------------
def encoder_layer_kernel(
    x_ref,        # (N, D)        flattened activations (B*L, D)
    mask_ref,     # (G, 1, L)     additive key-padding bias per (batch, head)
    rope_ref,     # (2, N, D)     [cos; sin] tables, per-token, head-replicated
    wproj_ref,    # (D, 5*D)      [scale*Wq | Wk | Wv | scale*Wq@R | Wk@R]
    wo_ref,       # (D, D)        output projection
    w1_ref,       # (D, F)
    w2_ref,       # (F, D)
    ln_ref,       # (4, D)        rows: [ln1_g, ln1_b, ln2_g, ln2_b]
    o_ref,        # (N, D)
):
    x = x_ref[...]                                   # (N, D)
    ln = ln_ref[...]                                 # (4, D)

    # ---- top LayerNorm ------------------------------------------------------
    xn = _layernorm(x, ln[0:1], ln[1:2])             # (N, D)

    # ---- fused QKV(+RoPE) projection: ONE 2-D matmul ------------------------
    proj = jnp.dot(xn, wproj_ref[...],
                   preferred_element_type=jnp.float32)        # (N, 5D)

    cos = rope_ref[0]                                # (N, D)
    sin = rope_ref[1]
    # RoPE: q' = q*cos + rotate_half(q)*sin ; rotate-half is pre-folded into
    # the packed weight (columns 3D:5D), so this is just two full-width FMAs.
    # All slices are lane-aligned at D-wide (32-lane) boundaries.
    q = proj[:, 0 * D:1 * D] * cos + proj[:, 3 * D:4 * D] * sin   # (N, D)
    k = proj[:, 1 * D:2 * D] * cos + proj[:, 4 * D:5 * D] * sin   # (N, D)
    v = proj[:, 2 * D:3 * D]                                      # (N, D)

    # ---- split heads into a leading batch dim: (N, D) -> (G, L, HD) ---------
    def split_heads(t):
        parts = [t[:, h * HD:(h + 1) * HD].reshape(B, 1, L, HD) for h in range(H)]
        return jnp.concatenate(parts, axis=1).reshape(G, L, HD)   # g = b*H + h

    q3 = split_heads(q)
    k3 = split_heads(k)
    v3 = split_heads(v)

    # ---- head-batched attention core ----------------------------------------
    s = jnp.einsum('gqd,gkd->gqk', q3, k3,
                   preferred_element_type=jnp.float32)        # (G, L, L)
    s = s + mask_ref[...]                            # key-padding bias
    m = jnp.max(s, axis=-1, keepdims=True)
    e = jnp.exp(s - m)
    p = e * pl.reciprocal(jnp.sum(e, axis=-1, keepdims=True), approx=False)
    o = jnp.einsum('gqk,gkd->gqd', p, v3,
                   preferred_element_type=jnp.float32)        # (G, L, HD)

    # ---- recombine heads into lane-dense (N, D), ONE output-proj matmul -----
    o4 = o.reshape(B, H, L, HD)
    o_merged = jnp.concatenate([o4[:, h] for h in range(H)], axis=-1)  # (B,L,D)
    o_merged = o_merged.reshape(N, D)
    attn = jnp.dot(o_merged, wo_ref[...],
                   preferred_element_type=jnp.float32)        # (N, D)

    # ---- first residual, mid LayerNorm, FFN, second residual ----------------
    x1 = x + attn
    xn2 = _layernorm(x1, ln[2:3], ln[3:4])
    h1 = _gelu_exact(jnp.dot(xn2, w1_ref[...],
                             preferred_element_type=jnp.float32))
    h2 = jnp.dot(h1, w2_ref[...], preferred_element_type=jnp.float32)
    o_ref[...] = x1 + h2


# ----------------------------- wrapper ---------------------------------------
def _rope_tables():
    """(2, N, D) [cos; sin] tables, rotate-half convention, base 10000,
    replicated across heads (lane dim) and batch (row dim)."""
    inv_freq = 1.0 / (10000.0 ** (jnp.arange(0, HD, 2, dtype=jnp.float32) / HD))
    pos = jnp.arange(L, dtype=jnp.float32)
    freqs = pos[:, None] * inv_freq[None, :]                       # (L, HD/2)
    cos_h = jnp.concatenate([jnp.cos(freqs), jnp.cos(freqs)], axis=-1)  # (L, HD)
    sin_h = jnp.concatenate([jnp.sin(freqs), jnp.sin(freqs)], axis=-1)
    cos = jnp.tile(jnp.tile(cos_h, (1, H)), (B, 1))                # (N, D)
    sin = jnp.tile(jnp.tile(sin_h, (1, H)), (B, 1))
    return jnp.stack([cos, sin], axis=0)                           # (2, N, D)


def _pack_params(params):
    """Pack the 10 weight tensors into 5 kernel inputs (no batch/head tiling).

    Packed projection weight (D, 5D):
        [ scale*Wq | Wk | Wv | scale*Wq@R | Wk@R ]
    where R is the block-diagonal (per-head) rotate-half matrix so that
    t @ R == rotate_half(t) == concat([-t[HD/2:], t[:HD/2]]) per head, and the
    q scaling (HD**-0.5) is folded into the Wq blocks.
    """
    wq, wk, wv, wo = params["wq"], params["wk"], params["wv"], params["wo"]
    scale = HD ** -0.5
    half = HD // 2
    eye = jnp.eye(half, dtype=jnp.float32)
    zero = jnp.zeros((half, half), jnp.float32)
    R_head = jnp.concatenate(
        [jnp.concatenate([zero, eye], axis=1),     # rows 0..half-1 : [0 | +I]
         jnp.concatenate([-eye, zero], axis=1)],   # rows half..    : [-I | 0]
        axis=0)                                                    # (HD, HD)
    R_full = jnp.kron(jnp.eye(H, dtype=jnp.float32), R_head)       # (D, D)

    wq_s = wq * scale
    w_proj = jnp.concatenate(
        [wq_s, wk, wv, wq_s @ R_full, wk @ R_full], axis=1)        # (D, 5D)

    ln = jnp.concatenate([params["ln1_g"], params["ln1_b"],
                          params["ln2_g"], params["ln2_b"]], axis=0)  # (4, D)
    return w_proj, wo, params["w1"], params["w2"], ln


def psm_plain_encoder_layer(x, padding_mask, params):
    """x: (B, L, D) f32, padding_mask: (B, L) bool (True = padded key)."""
    x2d = x.reshape(N, D)

    # -1e9 instead of -inf: identical unless an entire key row is padded
    # (torch would give NaN there); documented deviation.
    mask_bias = jnp.where(padding_mask, -1e9, 0.0).astype(jnp.float32)  # (B, L)
    mask_g = jnp.repeat(mask_bias, H, axis=0).reshape(G, 1, L)          # g=b*H+h

    rope = _rope_tables()
    w_proj, w_o, w1, w2, ln = _pack_params(params)

    vmem = pl.BlockSpec(memory_space=pltpu.MemorySpace.VMEM)
    out2d = pl.pallas_call(
        encoder_layer_kernel,
        out_shape=jax.ShapeDtypeStruct((N, D), jnp.float32),
        in_specs=[vmem] * 8,
        out_specs=vmem,
    )(x2d, mask_g, rope, w_proj, w_o, w1, w2, ln)

    return out2d.reshape(B, L, D)


# ----------------------------- main ------------------------------------------
if __name__ == "__main__":
    key = jax.random.PRNGKey(0)
    keys = jax.random.split(key, 8)

    x = jax.random.normal(keys[0], (B, L, D), dtype=jnp.float32)

    # deterministic padding mask: last position of batch 1 padded
    padding_mask = jnp.zeros((B, L), dtype=bool).at[1, L - 1].set(True)

    # deterministic parameter init (nn.Linear-style scale); weights stored as
    # (in, out) so the math is x @ W (== PyTorch x @ W.T with W stored (out, in))
    def lin(k, fan_in, fan_out):
        bound = 1.0 / math.sqrt(fan_in)
        return jax.random.uniform(k, (fan_in, fan_out), jnp.float32, -bound, bound)

    params = {
        "wq": lin(keys[1], D, D),
        "wk": lin(keys[2], D, D),
        "wv": lin(keys[3], D, D),
        "wo": lin(keys[4], D, D),
        "w1": lin(keys[5], D, F),
        "w2": lin(keys[6], F, D),
        "ln1_g": jnp.ones((1, D), jnp.float32),
        "ln1_b": jnp.zeros((1, D), jnp.float32),
        "ln2_g": jnp.ones((1, D), jnp.float32),
        "ln2_b": jnp.zeros((1, D), jnp.float32),
    }

    out = psm_plain_encoder_layer(x, padding_mask, params)
    out = jax.block_until_ready(out)
    assert out.shape == (B, L, D) and out.dtype == jnp.float32
    assert bool(jnp.all(jnp.isfinite(out)))
    print("KERNEL_OK")
</pallas_src>

<mosaic_0001>
module attributes {stable_mosaic.version = 11 : i64} {
  func.func @encoder_layer_kernel(%arg0: memref<16x32xf32, #tpu.memory_space<vmem>>, %arg1: memref<8x1x8xf32, #tpu.memory_space<vmem>>, %arg2: memref<2x16x32xf32, #tpu.memory_space<vmem>>, %arg3: memref<32x160xf32, #tpu.memory_space<vmem>>, %arg4: memref<32x32xf32, #tpu.memory_space<vmem>>, %arg5: memref<32x64xf32, #tpu.memory_space<vmem>>, %arg6: memref<64x32xf32, #tpu.memory_space<vmem>>, %arg7: memref<4x32xf32, #tpu.memory_space<vmem>>, %arg8: memref<16x32xf32, #tpu.memory_space<vmem>>) attributes {dimension_semantics = [], scalar_prefetch = 0 : i64, scratch_operands = 0 : i64, tpu.core_type = #tpu.core_type<tc>} {
    %c0 = arith.constant 0 : index
    %c0_0 = arith.constant 0 : index
    %0 = vector.load %arg0[%c0, %c0_0] : memref<16x32xf32, #tpu.memory_space<vmem>>, vector<16x32xf32>
    %c0_1 = arith.constant 0 : index
    %c0_2 = arith.constant 0 : index
    %1 = vector.load %arg7[%c0_1, %c0_2] : memref<4x32xf32, #tpu.memory_space<vmem>>, vector<4x32xf32>
    %2 = vector.extract_strided_slice %1 {offsets = [0, 0], sizes = [1, 32], strides = [1, 1]} : vector<4x32xf32> to vector<1x32xf32>
    %3 = vector.extract_strided_slice %1 {offsets = [1, 0], sizes = [1, 32], strides = [1, 1]} : vector<4x32xf32> to vector<1x32xf32>
    %cst = arith.constant dense<0.000000e+00> : vector<16xf32>
    %4 = vector.multi_reduction <add>, %0, %cst [1] : vector<16x32xf32> to vector<16xf32>
    %5 = vector.shape_cast %4 : vector<16xf32> to vector<16x1xf32>
    %cst_3 = arith.constant 3.200000e+01 : f32
    %6 = vector.broadcast %cst_3 : f32 to vector<16x1xf32>
    %7 = arith.divf %5, %6 : vector<16x1xf32>
    %8 = vector.broadcast %7 : vector<16x1xf32> to vector<16x32xf32>
    %9 = arith.subf %0, %8 : vector<16x32xf32>
    %10 = vector.broadcast %7 : vector<16x1xf32> to vector<16x32xf32>
    %11 = arith.subf %0, %10 : vector<16x32xf32>
    %12 = arith.mulf %9, %11 : vector<16x32xf32>
    %cst_4 = arith.constant dense<0.000000e+00> : vector<16xf32>
    %13 = vector.multi_reduction <add>, %12, %cst_4 [1] : vector<16x32xf32> to vector<16xf32>
    %14 = vector.shape_cast %13 : vector<16xf32> to vector<16x1xf32>
    %cst_5 = arith.constant 3.200000e+01 : f32
    %15 = vector.broadcast %cst_5 : f32 to vector<16x1xf32>
    %16 = arith.divf %14, %15 : vector<16x1xf32>
    %17 = vector.broadcast %7 : vector<16x1xf32> to vector<16x32xf32>
    %18 = arith.subf %0, %17 : vector<16x32xf32>
    %cst_6 = arith.constant 9.99999974E-6 : f32
    %19 = vector.broadcast %cst_6 : f32 to vector<16x1xf32>
    %20 = arith.addf %16, %19 : vector<16x1xf32>
    %21 = math.rsqrt %20 : vector<16x1xf32>
    %22 = vector.broadcast %21 : vector<16x1xf32> to vector<16x32xf32>
    %23 = arith.mulf %18, %22 : vector<16x32xf32>
    %24 = vector.broadcast %2 : vector<1x32xf32> to vector<16x32xf32>
    %25 = arith.mulf %23, %24 : vector<16x32xf32>
    %26 = vector.broadcast %3 : vector<1x32xf32> to vector<16x32xf32>
    %27 = arith.addf %25, %26 : vector<16x32xf32>
    %c0_7 = arith.constant 0 : index
    %c0_8 = arith.constant 0 : index
    %28 = vector.load %arg3[%c0_7, %c0_8] : memref<32x160xf32, #tpu.memory_space<vmem>>, vector<32x160xf32>
    %cst_9 = arith.constant dense<0.000000e+00> : vector<16x160xf32>
    %29 = tpu.matmul %27, %28, %cst_9 {dimension_numbers = #tpu.dot_dimension_numbers<[1], [0], [0], [1], [0, 0, 1, 1], [], []>} : vector<16x32xf32>, vector<32x160xf32>, vector<16x160xf32> -> vector<16x160xf32>
    %c0_10 = arith.constant 0 : index
    %c0_11 = arith.constant 0 : index
    %c0_12 = arith.constant 0 : index
    %30 = vector.load %arg2[%c0_10, %c0_11, %c0_12] : memref<2x16x32xf32, #tpu.memory_space<vmem>>, vector<1x16x32xf32>
    %31 = vector.shape_cast %30 : vector<1x16x32xf32> to vector<16x32xf32>
    %c1 = arith.constant 1 : index
    %c0_13 = arith.constant 0 : index
    %c0_14 = arith.constant 0 : index
    %32 = vector.load %arg2[%c1, %c0_13, %c0_14] : memref<2x16x32xf32, #tpu.memory_space<vmem>>, vector<1x16x32xf32>
    %33 = vector.shape_cast %32 : vector<1x16x32xf32> to vector<16x32xf32>
    %34 = vector.extract_strided_slice %29 {offsets = [0, 0], sizes = [16, 32], strides = [1, 1]} : vector<16x160xf32> to vector<16x32xf32>
    %35 = arith.mulf %34, %31 : vector<16x32xf32>
    %36 = vector.extract_strided_slice %29 {offsets = [0, 96], sizes = [16, 32], strides = [1, 1]} : vector<16x160xf32> to vector<16x32xf32>
    %37 = arith.mulf %36, %33 : vector<16x32xf32>
    %38 = arith.addf %35, %37 : vector<16x32xf32>
    %39 = vector.extract_strided_slice %29 {offsets = [0, 32], sizes = [16, 32], strides = [1, 1]} : vector<16x160xf32> to vector<16x32xf32>
    %40 = arith.mulf %39, %31 : vector<16x32xf32>
    %41 = vector.extract_strided_slice %29 {offsets = [0, 128], sizes = [16, 32], strides = [1, 1]} : vector<16x160xf32> to vector<16x32xf32>
    %42 = arith.mulf %41, %33 : vector<16x32xf32>
    %43 = arith.addf %40, %42 : vector<16x32xf32>
    %44 = vector.extract_strided_slice %29 {offsets = [0, 64], sizes = [16, 32], strides = [1, 1]} : vector<16x160xf32> to vector<16x32xf32>
    %45 = vector.extract_strided_slice %38 {offsets = [0, 0], sizes = [16, 8], strides = [1, 1]} : vector<16x32xf32> to vector<16x8xf32>
    %46 = vector.shape_cast %45 : vector<16x8xf32> to vector<2x1x8x8xf32>
    %47 = vector.extract_strided_slice %38 {offsets = [0, 8], sizes = [16, 8], strides = [1, 1]} : vector<16x32xf32> to vector<16x8xf32>
    %48 = vector.shape_cast %47 : vector<16x8xf32> to vector<2x1x8x8xf32>
    %49 = vector.extract_strided_slice %38 {offsets = [0, 16], sizes = [16, 8], strides = [1, 1]} : vector<16x32xf32> to vector<16x8xf32>
    %50 = vector.shape_cast %49 : vector<16x8xf32> to vector<2x1x8x8xf32>
    %51 = vector.extract_strided_slice %38 {offsets = [0, 24], sizes = [16, 8], strides = [1, 1]} : vector<16x32xf32> to vector<16x8xf32>
    %52 = vector.shape_cast %51 : vector<16x8xf32> to vector<2x1x8x8xf32>
    %53 = tpu.concatenate %46, %48, %50, %52 in 1 : vector<2x1x8x8xf32>, vector<2x1x8x8xf32>, vector<2x1x8x8xf32>, vector<2x1x8x8xf32> -> vector<2x4x8x8xf32>
    %54 = vector.shape_cast %53 : vector<2x4x8x8xf32> to vector<8x8x8xf32>
    %55 = vector.extract_strided_slice %43 {offsets = [0, 0], sizes = [16, 8], strides = [1, 1]} : vector<16x32xf32> to vector<16x8xf32>
    %56 = vector.shape_cast %55 : vector<16x8xf32> to vector<2x1x8x8xf32>
    %57 = vector.extract_strided_slice %43 {offsets = [0, 8], sizes = [16, 8], strides = [1, 1]} : vector<16x32xf32> to vector<16x8xf32>
    %58 = vector.shape_cast %57 : vector<16x8xf32> to vector<2x1x8x8xf32>
    %59 = vector.extract_strided_slice %43 {offsets = [0, 16], sizes = [16, 8], strides = [1, 1]} : vector<16x32xf32> to vector<16x8xf32>
    %60 = vector.shape_cast %59 : vector<16x8xf32> to vector<2x1x8x8xf32>
    %61 = vector.extract_strided_slice %43 {offsets = [0, 24], sizes = [16, 8], strides = [1, 1]} : vector<16x32xf32> to vector<16x8xf32>
    %62 = vector.shape_cast %61 : vector<16x8xf32> to vector<2x1x8x8xf32>
    %63 = tpu.concatenate %56, %58, %60, %62 in 1 : vector<2x1x8x8xf32>, vector<2x1x8x8xf32>, vector<2x1x8x8xf32>, vector<2x1x8x8xf32> -> vector<2x4x8x8xf32>
    %64 = vector.shape_cast %63 : vector<2x4x8x8xf32> to vector<8x8x8xf32>
    %65 = vector.extract_strided_slice %44 {offsets = [0, 0], sizes = [16, 8], strides = [1, 1]} : vector<16x32xf32> to vector<16x8xf32>
    %66 = vector.shape_cast %65 : vector<16x8xf32> to vector<2x1x8x8xf32>
    %67 = vector.extract_strided_slice %44 {offsets = [0, 8], sizes = [16, 8], strides = [1, 1]} : vector<16x32xf32> to vector<16x8xf32>
    %68 = vector.shape_cast %67 : vector<16x8xf32> to vector<2x1x8x8xf32>
    %69 = vector.extract_strided_slice %44 {offsets = [0, 16], sizes = [16, 8], strides = [1, 1]} : vector<16x32xf32> to vector<16x8xf32>
    %70 = vector.shape_cast %69 : vector<16x8xf32> to vector<2x1x8x8xf32>
    %71 = vector.extract_strided_slice %44 {offsets = [0, 24], sizes = [16, 8], strides = [1, 1]} : vector<16x32xf32> to vector<16x8xf32>
    %72 = vector.shape_cast %71 : vector<16x8xf32> to vector<2x1x8x8xf32>
    %73 = tpu.concatenate %66, %68, %70, %72 in 1 : vector<2x1x8x8xf32>, vector<2x1x8x8xf32>, vector<2x1x8x8xf32>, vector<2x1x8x8xf32> -> vector<2x4x8x8xf32>
    %74 = vector.shape_cast %73 : vector<2x4x8x8xf32> to vector<8x8x8xf32>
    "tpu.trace_start"() <{level = 10 : i32, message = "gqd,gkd->gqk"}> : () -> ()
    %cst_15 = arith.constant dense<0.000000e+00> : vector<8x8x8xf32>
    %75 = tpu.matmul %54, %64, %cst_15 {dimension_numbers = #tpu.dot_dimension_numbers<[2], [2], [1], [1], [0, 0, 0, 1, 1, 1], [0], [0]>} : vector<8x8x8xf32>, vector<8x8x8xf32>, vector<8x8x8xf32> -> vector<8x8x8xf32>
    "tpu.trace_stop"() : () -> ()
    %c0_16 = arith.constant 0 : index
    %c0_17 = arith.constant 0 : index
    %c0_18 = arith.constant 0 : index
    %76 = vector.load %arg1[%c0_16, %c0_17, %c0_18] : memref<8x1x8xf32, #tpu.memory_space<vmem>>, vector<8x1x8xf32>
    %77 = vector.broadcast %76 : vector<8x1x8xf32> to vector<8x8x8xf32>
    %78 = arith.addf %75, %77 : vector<8x8x8xf32>
    %cst_19 = arith.constant dense<0xFF800000> : vector<8x8xf32>
    %79 = vector.multi_reduction <maximumf>, %78, %cst_19 [2] : vector<8x8x8xf32> to vector<8x8xf32>
    %80 = vector.shape_cast %79 : vector<8x8xf32> to vector<8x8x1xf32>
    %81 = vector.broadcast %80 : vector<8x8x1xf32> to vector<8x8x8xf32>
    %82 = arith.subf %78, %81 : vector<8x8x8xf32>
    %83 = math.exp %82 : vector<8x8x8xf32>
    %cst_20 = arith.constant dense<0.000000e+00> : vector<8x8xf32>
    %84 = vector.multi_reduction <add>, %83, %cst_20 [2] : vector<8x8x8xf32> to vector<8x8xf32>
    %85 = vector.shape_cast %84 : vector<8x8xf32> to vector<8x8x1xf32>
    %86 = tpu.reciprocal %85 : vector<8x8x1xf32> -> vector<8x8x1xf32>
    %87 = vector.broadcast %86 : vector<8x8x1xf32> to vector<8x8x8xf32>
    %88 = arith.mulf %83, %87 : vector<8x8x8xf32>
    "tpu.trace_start"() <{level = 10 : i32, message = "gqk,gkd->gqd"}> : () -> ()
    %cst_21 = arith.constant dense<0.000000e+00> : vector<8x8x8xf32>
    %89 = tpu.matmul %88, %74, %cst_21 {dimension_numbers = #tpu.dot_dimension_numbers<[2], [1], [1], [2], [0, 0, 0, 1, 1, 2], [0], [0]>} : vector<8x8x8xf32>, vector<8x8x8xf32>, vector<8x8x8xf32> -> vector<8x8x8xf32>
    "tpu.trace_stop"() : () -> ()
    %90 = vector.shape_cast %89 : vector<8x8x8xf32> to vector<2x4x8x8xf32>
    %91 = vector.extract_strided_slice %90 {offsets = [0, 0, 0, 0], sizes = [2, 1, 8, 8], strides = [1, 1, 1, 1]} : vector<2x4x8x8xf32> to vector<2x1x8x8xf32>
    %92 = vector.shape_cast %91 : vector<2x1x8x8xf32> to vector<2x8x8xf32>
    %93 = vector.extract_strided_slice %90 {offsets = [0, 1, 0, 0], sizes = [2, 1, 8, 8], strides = [1, 1, 1, 1]} : vector<2x4x8x8xf32> to vector<2x1x8x8xf32>
    %94 = vector.shape_cast %93 : vector<2x1x8x8xf32> to vector<2x8x8xf32>
    %95 = vector.extract_strided_slice %90 {offsets = [0, 2, 0, 0], sizes = [2, 1, 8, 8], strides = [1, 1, 1, 1]} : vector<2x4x8x8xf32> to vector<2x1x8x8xf32>
    %96 = vector.shape_cast %95 : vector<2x1x8x8xf32> to vector<2x8x8xf32>
    %97 = vector.extract_strided_slice %90 {offsets = [0, 3, 0, 0], sizes = [2, 1, 8, 8], strides = [1, 1, 1, 1]} : vector<2x4x8x8xf32> to vector<2x1x8x8xf32>
    %98 = vector.shape_cast %97 : vector<2x1x8x8xf32> to vector<2x8x8xf32>
    %99 = tpu.concatenate %92, %94, %96, %98 in 2 : vector<2x8x8xf32>, vector<2x8x8xf32>, vector<2x8x8xf32>, vector<2x8x8xf32> -> vector<2x8x32xf32>
    %100 = vector.shape_cast %99 : vector<2x8x32xf32> to vector<16x32xf32>
    %c0_22 = arith.constant 0 : index
    %c0_23 = arith.constant 0 : index
    %101 = vector.load %arg4[%c0_22, %c0_23] : memref<32x32xf32, #tpu.memory_space<vmem>>, vector<32x32xf32>
    %cst_24 = arith.constant dense<0.000000e+00> : vector<16x32xf32>
    %102 = tpu.matmul %100, %101, %cst_24 {dimension_numbers = #tpu.dot_dimension_numbers<[1], [0], [0], [1], [0, 0, 1, 1], [], []>} : vector<16x32xf32>, vector<32x32xf32>, vector<16x32xf32> -> vector<16x32xf32>
    %103 = arith.addf %0, %102 : vector<16x32xf32>
    %104 = vector.extract_strided_slice %1 {offsets = [2, 0], sizes = [1, 32], strides = [1, 1]} : vector<4x32xf32> to vector<1x32xf32>
    %105 = vector.extract_strided_slice %1 {offsets = [3, 0], sizes = [1, 32], strides = [1, 1]} : vector<4x32xf32> to vector<1x32xf32>
    %cst_25 = arith.constant dense<0.000000e+00> : vector<16xf32>
    %106 = vector.multi_reduction <add>, %103, %cst_25 [1] : vector<16x32xf32> to vector<16xf32>
    %107 = vector.shape_cast %106 : vector<16xf32> to vector<16x1xf32>
    %cst_26 = arith.constant 3.200000e+01 : f32
    %108 = vector.broadcast %cst_26 : f32 to vector<16x1xf32>
    %109 = arith.divf %107, %108 : vector<16x1xf32>
    %110 = vector.broadcast %109 : vector<16x1xf32> to vector<16x32xf32>
    %111 = arith.subf %103, %110 : vector<16x32xf32>
    %112 = vector.broadcast %109 : vector<16x1xf32> to vector<16x32xf32>
    %113 = arith.subf %103, %112 : vector<16x32xf32>
    %114 = arith.mulf %111, %113 : vector<16x32xf32>
    %cst_27 = arith.constant dense<0.000000e+00> : vector<16xf32>
    %115 = vector.multi_reduction <add>, %114, %cst_27 [1] : vector<16x32xf32> to vector<16xf32>
    %116 = vector.shape_cast %115 : vector<16xf32> to vector<16x1xf32>
    %cst_28 = arith.constant 3.200000e+01 : f32
    %117 = vector.broadcast %cst_28 : f32 to vector<16x1xf32>
    %118 = arith.divf %116, %117 : vector<16x1xf32>
    %119 = vector.broadcast %109 : vector<16x1xf32> to vector<16x32xf32>
    %120 = arith.subf %103, %119 : vector<16x32xf32>
    %cst_29 = arith.constant 9.99999974E-6 : f32
    %121 = vector.broadcast %cst_29 : f32 to vector<16x1xf32>
    %122 = arith.addf %118, %121 : vector<16x1xf32>
    %123 = math.rsqrt %122 : vector<16x1xf32>
    %124 = vector.broadcast %123 : vector<16x1xf32> to vector<16x32xf32>
    %125 = arith.mulf %120, %124 : vector<16x32xf32>
    %126 = vector.broadcast %104 : vector<1x32xf32> to vector<16x32xf32>
    %127 = arith.mulf %125, %126 : vector<16x32xf32>
    %128 = vector.broadcast %105 : vector<1x32xf32> to vector<16x32xf32>
    %129 = arith.addf %127, %128 : vector<16x32xf32>
    %c0_30 = arith.constant 0 : index
    %c0_31 = arith.constant 0 : index
    %130 = vector.load %arg5[%c0_30, %c0_31] : memref<32x64xf32, #tpu.memory_space<vmem>>, vector<32x64xf32>
    %cst_32 = arith.constant dense<0.000000e+00> : vector<16x64xf32>
    %131 = tpu.matmul %129, %130, %cst_32 {dimension_numbers = #tpu.dot_dimension_numbers<[1], [0], [0], [1], [0, 0, 1, 1], [], []>} : vector<16x32xf32>, vector<32x64xf32>, vector<16x64xf32> -> vector<16x64xf32>
    %cst_33 = arith.constant 5.000000e-01 : f32
    %132 = vector.broadcast %cst_33 : f32 to vector<16x64xf32>
    %133 = arith.mulf %132, %131 : vector<16x64xf32>
    %cst_34 = arith.constant 0.707106769 : f32
    %134 = vector.broadcast %cst_34 : f32 to vector<16x64xf32>
    %135 = arith.mulf %131, %134 : vector<16x64xf32>
    %136 = math.erf %135 : vector<16x64xf32>
    %cst_35 = arith.constant 1.000000e+00 : f32
    %137 = vector.broadcast %cst_35 : f32 to vector<16x64xf32>
    %138 = arith.addf %137, %136 : vector<16x64xf32>
    %139 = arith.mulf %133, %138 : vector<16x64xf32>
    %c0_36 = arith.constant 0 : index
    %c0_37 = arith.constant 0 : index
    %140 = vector.load %arg6[%c0_36, %c0_37] : memref<64x32xf32, #tpu.memory_space<vmem>>, vector<64x32xf32>
    %cst_38 = arith.constant dense<0.000000e+00> : vector<16x32xf32>
    %141 = tpu.matmul %139, %140, %cst_38 {dimension_numbers = #tpu.dot_dimension_numbers<[1], [0], [0], [1], [0, 0, 1, 1], [], []>} : vector<16x64xf32>, vector<64x32xf32>, vector<16x32xf32> -> vector<16x32xf32>
    %142 = arith.addf %103, %141 : vector<16x32xf32>
    %c0_39 = arith.constant 0 : index
    %c0_40 = arith.constant 0 : index
    %143 = vector.load %arg8[%c0_39, %c0_40] : memref<16x32xf32, #tpu.memory_space<vmem>>, vector<16x32xf32>
    tpu.vector_store %arg8[%c0_39, %c0_40], %142 {strides = array<i32>} : memref<16x32xf32, #tpu.memory_space<vmem>>, vector<16x32xf32>,
    return
  }
}

</mosaic_0001>

<llo_original>
// kernel: tpu_custom_call.1
$region0: #{tpu_custom_call.1}
  #allocation0 [shape = 'u32[]', space=smem, size = 0x4, offset = 0x4, fixed_abs, tag = 'smem constant byte address 0x4 - core index']
  #allocation1 [shape = 'u32[144,128]{1,0:T(1,128)}', space=vmem, size = 0x12000, scoped, tag = 'internal scratch']
  %s0 = inlined_call_operand.hbm [shape: f32[16,32], index: 0, kind: input, shape index: {}]
  %s1 = inlined_call_operand.vmem [shape: f32[8,1,8], index: 1, kind: input, shape index: {}]
  %s2 = inlined_call_operand.vmem [shape: f32[2,16,32], index: 2, kind: input, shape index: {}]
  %s3 = inlined_call_operand.vmem [shape: f32[32,160], index: 3, kind: input, shape index: {}]
  %s4 = inlined_call_operand.hbm [shape: f32[32,32], index: 4, kind: input, shape index: {}]
  %s5 = inlined_call_operand.hbm [shape: f32[32,64], index: 5, kind: input, shape index: {}]
  %s6 = inlined_call_operand.vmem [shape: f32[64,32], index: 6, kind: input, shape index: {}]
  %s7 = inlined_call_operand.vmem [shape: f32[4,32], index: 7, kind: input, shape index: {}]
  %s8 = inlined_call_operand.hbm [shape: f32[16,32], index: 8, kind: output, shape index: {}]
  %s9 = sld [smem:[#allocation0]]
  $region54: #{tpu_custom_call.1} parent=0
    _
  %s11 = ssub.s32 1, %s9
  %s12 = scalar_select 0, %s11, %s9
  $region1: #{tpu_custom_call.1} parent=0
    #allocation2 [shape = 'u8[8192]{0}', space=vmem, size = 0x2000, scoped, tag = 'input window, operand 0, single buffered']
    #allocation3 [shape = 's32[1]{0}', space=sflag, size = 0x4, scoped, tag = 'scoped memory for tpu_custom_call.1']
    #allocation4 [shape = 's32[1]{0}', space=sflag, size = 0x4, scoped, tag = 'scoped memory for tpu_custom_call.1']
    #allocation5 [shape = 'u8[16384]{0}', space=vmem, size = 0x4000, scoped, tag = 'input window, operand 4, single buffered']
    #allocation6 [shape = 's32[1]{0}', space=sflag, size = 0x4, scoped, tag = 'scoped memory for tpu_custom_call.1']
    #allocation7 [shape = 'u8[16384]{0}', space=vmem, size = 0x4000, scoped, tag = 'input window, operand 5, single buffered']
    #allocation8 [shape = 'u8[8192]{0}', space=vmem, size = 0x2000, scoped, tag = 'output window, operand 0, single buffered']
    %13 = vsyncpa [#allocation3], 0
    %14 = vsyncpa [#allocation6], 0
    %15 = vsyncpa [#allocation4], 0
    // Predicated region
    $region2: #{tpu_custom_call.1} parent=1 // pred_check
      _
    $region3: #{tpu_custom_call.1} parent=1 // pred_check_branch
      %17 = sbr.rel (0) target = $region5
    $region4: #{tpu_custom_call.1} parent=1 // pred_region
      %s19 = ssub.s32 256, 256
      %20 = vsyncadd [#allocation3], %s19
      %s21 = sshll.u32 [#allocation2], 4
      %s22 = int_to_ptr.vmem [resolvable:$true] %s21
      %27 = dma.hbm_to_vmem [thread:$0]  %s0, 256, %s22, [#allocation3], 128, 128, 8
    $region5: #{tpu_custom_call.1} parent=1 // pred_fallthru
      _
    // Predicated region
    $region6: #{tpu_custom_call.1} parent=1 // pred_check
      _
    $region7: #{tpu_custom_call.1} parent=1 // pred_check_branch
      %29 = sbr.rel (0) target = $region9
    $region8: #{tpu_custom_call.1} parent=1 // pred_region
      _
    $region9: #{tpu_custom_call.1} parent=1 // pred_fallthru
      _
    // Predicated region
    $region10: #{tpu_custom_call.1} parent=1 // pred_check
      _
    $region11: #{tpu_custom_call.1} parent=1 // pred_check_branch
      %31 = sbr.rel (0) target = $region13
    $region12: #{tpu_custom_call.1} parent=1 // pred_region
      _
    $region13: #{tpu_custom_call.1} parent=1 // pred_fallthru
      _
    // Predicated region
    $region14: #{tpu_custom_call.1} parent=1 // pred_check
      _
    $region15: #{tpu_custom_call.1} parent=1 // pred_check_branch
      %33 = sbr.rel (0) target = $region17
    $region16: #{tpu_custom_call.1} parent=1 // pred_region
      _
    $region17: #{tpu_custom_call.1} parent=1 // pred_fallthru
      _
    // Predicated region
    $region18: #{tpu_custom_call.1} parent=1 // pred_check
      _
    $region19: #{tpu_custom_call.1} parent=1 // pred_check_branch
      %35 = sbr.rel (0) target = $region21
    $region20: #{tpu_custom_call.1} parent=1 // pred_region
      %s37 = ssub.s32 512, 512
      %38 = vsyncadd [#allocation6], %s37
      %s39 = sshll.u32 [#allocation5], 4
      %s40 = int_to_ptr.vmem [resolvable:$true] %s39
      %45 = dma.hbm_to_vmem [thread:$0]  %s4, 512, %s40, [#allocation6], 128, 128, 8
    $region21: #{tpu_custom_call.1} parent=1 // pred_fallthru
      _
    // Predicated region
    $region22: #{tpu_custom_call.1} parent=1 // pred_check
      _
    $region23: #{tpu_custom_call.1} parent=1 // pred_check_branch
      %47 = sbr.rel (0) target = $region25
    $region24: #{tpu_custom_call.1} parent=1 // pred_region
      %s49 = ssub.s32 512, 512
      %50 = vsyncadd [#allocation6], %s49
      %s51 = sshll.u32 [#allocation7], 4
      %s52 = int_to_ptr.vmem [resolvable:$true] %s51
      %57 = dma.hbm_to_vmem [thread:$0]  %s5, 512, %s52, [#allocation6], 128, 128, 8
    $region25: #{tpu_custom_call.1} parent=1 // pred_fallthru
      _
    // Predicated region
    $region26: #{tpu_custom_call.1} parent=1 // pred_check
      _
    $region27: #{tpu_custom_call.1} parent=1 // pred_check_branch
      %59 = sbr.rel (0) target = $region29
    $region28: #{tpu_custom_call.1} parent=1 // pred_region
      _
    $region29: #{tpu_custom_call.1} parent=1 // pred_fallthru
      _
    // Predicated region
    $region30: #{tpu_custom_call.1} parent=1 // pred_check
      _
    $region31: #{tpu_custom_call.1} parent=1 // pred_check_branch
      %61 = sbr.rel (0) target = $region33
    $region32: #{tpu_custom_call.1} parent=1 // pred_region
      _
    $region33: #{tpu_custom_call.1} parent=1 // pred_fallthru
      _
    // Predicated region
    $region34: #{tpu_custom_call.1} parent=1 // pred_check
      _
    $region35: #{tpu_custom_call.1} parent=1 // pred_check_branch
      %63 = sbr.rel (0) target = $region37
    $region36: #{tpu_custom_call.1} parent=1 // pred_region
      %64 = dma.done [#allocation3], 256
    $region37: #{tpu_custom_call.1} parent=1 // pred_fallthru
      _
    // Predicated region
    $region38: #{tpu_custom_call.1} parent=1 // pred_check
      _
    $region39: #{tpu_custom_call.1} parent=1 // pred_check_branch
      %66 = sbr.rel (0) target = $region41
    $region40: #{tpu_custom_call.1} parent=1 // pred_region
      %67 = dma.done [#allocation6], 512
    $region41: #{tpu_custom_call.1} parent=1 // pred_fallthru
      _
    // Predicated region
    $region42: #{tpu_custom_call.1} parent=1 // pred_check
      _
    $region43: #{tpu_custom_call.1} parent=1 // pred_check_branch
      %69 = sbr.rel (0) target = $region45
    $region44: #{tpu_custom_call.1} parent=1 // pred_region
      %70 = dma.done [#allocation6], 512
    $region45: #{tpu_custom_call.1} parent=1 // pred_fallthru
      _
    %v71 = vld [vmem:[#allocation2] sm:$0xff]
    %v72 = vld [vmem:[#allocation2 + $0x8] sm:$0xff]
    %v73 = vld [vmem:[%s7] sm:$0xf]
    %vm74 = vcmask 261120
    %v75 = vsel %vm74, %v71, 0.0
    %76 = vadd.xlane.f32.xlu0 %v75
    %v77 = vpop.xlane.xlu0 %76
    %v78 = vsel %vm74, %v72, 0.0
    %79 = vadd.xlane.f32.xlu0 %v78
    %v80 = vpop.xlane.xlu0 %79
    %v81 = vrcp.pop 32.0
    %v82 = vmul.f32 %v77, %v81
    %v83 = vmul.f32 %v80, %v81
    %v84 = vsub.f32 %v71, %v82
    %v85 = vsub.f32 %v72, %v83
    %v86 = vmul.f32 %v84, %v84
    %v87 = vmul.f32 %v85, %v85
    %v88 = vsel %vm74, %v86, 0.0
    %89 = vadd.xlane.f32.xlu0 %v88
    %v90 = vpop.xlane.xlu0 %89
    %v91 = vsel %vm74, %v87, 0.0
    %92 = vadd.xlane.f32.xlu0 %v91
    %v93 = vpop.xlane.xlu0 %92
    %v94 = vmul.f32 %v90, %v81
    %v95 = vmul.f32 %v93, %v81
    %v96 = vadd.f32 %v94, 1e-05
    %v97 = vadd.f32 %v95, 1e-05
    %v98 = vrsqrt.pop %v96
    %v99 = vrsqrt.pop %v97
    %v100 = vmul.f32 %v84, %v98
    %v101 = vmul.f32 %v85, %v99
    %v102 = vlaneseq
    %v103 = vshrl.u32 %v102, 7
    %v104 = vsub.s32 0, %v103
    %v105 = vrot.slane %v73, %v104
    %v106 = vmul.f32 %v100, %v105
    %v107 = vmul.f32 %v101, %v105
    %v108 = vlaneseq
    %v109 = vshrl.u32 %v108, 7
    %v110 = vsub.s32 1, %v109
    %v111 = vrot.slane %v73, %v110
    %v112 = vadd.f32 %v106, %v111
    %v113 = vadd.f32 %v107, %v111
    %v114 = vld [vmem:[%s3] sm:$0xff]
    %v115 = vld [vmem:[%s3 + $0x8] sm:$0xff]
    %v116 = vld [vmem:[%s3 + $0x10] sm:$0xff]
    %v117 = vld [vmem:[%s3 + $0x18] sm:$0xff]
    %v118 = vld [vmem:[%s3 + $0x20] sm:$0xff]
    %v119 = vld [vmem:[%s3 + $0x28] sm:$0xff]
    %v120 = vld [vmem:[%s3 + $0x30] sm:$0xff]
    %v121 = vld [vmem:[%s3 + $0x38] sm:$0xff]
    %v123 = vsel %vm74, %v112, 0
    %v126 = vsel %vm74, %v113, 0
    %128 = vmatprep.subr.mxu0 %v115
    %129 = vmatpush1.msra.mxu0 %v114
    %130 = vmatprep.subr.mxu0 %v117
    %131 = vmatpush1.msra.mxu0 %v116
    %132 = vmatprep.subr.mxu0 %v119
    %133 = vmatpush1.msra.mxu0 %v118
    %134 = vmatprep.subr.mxu0 %v121
    %135 = vmatpush1.msra.mxu0 %v120
    %136 = vmatprep.subr.mxu0 0.0
    %137 = vmatpush1.msra.mxu0 0.0
    %138 = vmatprep.subr.mxu0 0.0
    %139 = vmatpush1.msra.mxu0 0.0
    %140 = vmatprep.subr.mxu0 0.0
    %141 = vmatpush1.msra.mxu0 0.0
    %142 = vmatprep.subr.mxu0 0.0
    %143 = vmatpush1.msra.mxu0 0.0
    %144 = vmatprep.subr.mxu0 0.0
    %145 = vmatpush1.msra.mxu0 0.0
    %146 = vmatprep.subr.mxu0 0.0
    %147 = vmatpush1.msra.mxu0 0.0
    %148 = vmatprep.subr.mxu0 0.0
    %149 = vmatpush1.msra.mxu0 0.0
    %150 = vmatprep.subr.mxu0 0.0
    %151 = vmatpush1.msra.mxu0 0.0
    %152 = vmatprep.subr.mxu0 0.0
    %153 = vmatpush1.msra.mxu0 0.0
    %154 = vmatprep.subr.mxu0 0.0
    %155 = vmatpush1.msra.mxu0 0.0
    %156 = vmatprep.subr.mxu0 0.0
    %157 = vmatpush1.msra.mxu0 0.0
    %158 = vmatprep.subr.mxu0 0.0
    %159 = vmatpush1.msra.mxu0 0.0
    %160 = vmatprep.subr.mxu0 0.0
    %161 = vmatpush1.msra.mxu0 0.0
    %162 = vmatprep.subr.mxu0 0.0
    %163 = vmatpush1.msra.mxu0 0.0
    %164 = vmatprep.subr.mxu0 0.0
    %165 = vmatpush1.msra.mxu0 0.0
    %166 = vmatprep.subr.mxu0 0.0
    %167 = vmatpush1.msra.mxu0 0.0
    %168 = vmatprep.subr.mxu0 0.0
    %169 = vmatpush1.msra.mxu0 0.0
    %170 = vmatprep.subr.mxu0 0.0
    %171 = vmatpush1.msra.mxu0 0.0
    %172 = vmatprep.subr.mxu0 0.0
    %173 = vmatpush1.msra.mxu0 0.0
    %174 = vmatprep.subr.mxu0 0.0
    %175 = vmatpush1.msra.mxu0 0.0
    %176 = vmatprep.subr.mxu0 0.0
    %177 = vmatpush1.msra.mxu0 0.0
    %178 = vmatprep.subr.mxu0 0.0
    %179 = vmatpush1.msra.mxu0 0.0
    %180 = vmatprep.subr.mxu0 0.0
    %181 = vmatpush1.msra.mxu0 0.0
    %182 = vmatprep.subr.mxu0 0.0
    %183 = vmatpush1.msra.mxu0 0.0
    %184 = vmatprep.subr.mxu0 0.0
    %185 = vmatpush1.msra.mxu0 0.0
    %186 = vmatprep.subr.mxu0 0.0
    %187 = vmatpush1.msra.mxu0 0.0
    %188 = vmatprep.subr.mxu0 0.0
    %189 = vmatpush1.msra.mxu0 0.0
    %190 = vmatprep.subr.mxu0 0.0
    %191 = vmatpush1.msra.mxu0 0.0
    %192 = vmatprep.mubr.f32.mxu0 0.0
    %193 = vmatmul.mubr.f32.gmra.mrb[0].mxu0 %v123
    %v194 = vpop.f32.mrb[0].mxu0
    %v195 = vadd.f32 0.0, %v194
    %v196 = vpop.f32.mrb[0].mxu0
    %v197 = vadd.f32 0.0, %v196
    %198 = vmatprep.mubr.f32.mxu0 0.0
    %199 = vmatmul.mubr.f32.gmra.mrb[0].mxu0 %v126
    %v200 = vpop.f32.mrb[0].mxu0
    %v201 = vadd.f32 0.0, %v200
    %v202 = vpop.f32.mrb[0].mxu0
    %v203 = vadd.f32 0.0, %v202
    %204 = vdwg.mxu0
    %v205 = vld [vmem:[%s2] sm:$0xff]
    %v206 = vld [vmem:[%s2 + $0x8] sm:$0xff]
    %s207 = scalar_lea.vmem %s2, 16
    %v208 = vld [vmem:[%s207] sm:$0xff]
    %v209 = vld [vmem:[%s207 + $0x8] sm:$0xff]
    %v210 = vmul.f32 %v195, %v205
    %v211 = vmul.f32 %v201, %v206
    %214 = vrot.lane.b32.xlu0 %v208, 96
    %v215 = vpop.permute.xlu0 %214
    %216 = vrot.lane.b32.xlu0 %v209, 96
    %v217 = vpop.permute.xlu0 %216
    %v220 = vmul.f32 %v195, %v215
    %v221 = vmul.f32 %v201, %v217
    %224 = vrot.lane.b32.xlu0 %v220, 32
    %v225 = vpop.permute.xlu0 %224
    %226 = vrot.lane.b32.xlu0 %v221, 32
    %v227 = vpop.permute.xlu0 %226
    %v230 = vadd.f32 %v210, %v225
    %v231 = vadd.f32 %v211, %v227
    %234 = vrot.lane.b32.xlu0 %v205, 32
    %v235 = vpop.permute.xlu0 %234
    %236 = vrot.lane.b32.xlu0 %v206, 32
    %v237 = vpop.permute.xlu0 %236
    %v240 = vmul.f32 %v195, %v235
    %v241 = vmul.f32 %v201, %v237
    %v242 = vmul.f32 %v197, %v208
    %v243 = vmul.f32 %v203, %v209
    %246 = vrot.lane.b32.xlu0 %v242, 32
    %v247 = vpop.permute.xlu0 %246
    %248 = vrot.lane.b32.xlu0 %v243, 32
    %v249 = vpop.permute.xlu0 %248
    %v252 = vadd.f32 %v240, %v247
    %v253 = vadd.f32 %v241, %v249
    %256 = vrot.lane.b32.xlu0 %v230, 120
    %v257 = vpop.permute.xlu0 %256
    %258 = vrot.lane.b32.xlu0 %v231, 120
    %v259 = vpop.permute.xlu0 %258
    %260 = vrot.lane.b32.xlu0 %v230, 112
    %v261 = vpop.permute.xlu0 %260
    %262 = vrot.lane.b32.xlu0 %v231, 112
    %v263 = vpop.permute.xlu0 %262
    %264 = vrot.lane.b32.xlu0 %v230, 104
    %v265 = vpop.permute.xlu0 %264
    %266 = vrot.lane.b32.xlu0 %v231, 104
    %v267 = vpop.permute.xlu0 %266
    %270 = vrot.lane.b32.xlu0 %v252, 120
    %v271 = vpop.permute.xlu0 %270
    %272 = vrot.lane.b32.xlu0 %v253, 120
    %v273 = vpop.permute.xlu0 %272
    %274 = vrot.lane.b32.xlu0 %v252, 112
    %v275 = vpop.permute.xlu0 %274
    %276 = vrot.lane.b32.xlu0 %v253, 112
    %v277 = vpop.permute.xlu0 %276
    %278 = vrot.lane.b32.xlu0 %v252, 104
    %v279 = vpop.permute.xlu0 %278
    %280 = vrot.lane.b32.xlu0 %v253, 104
    %v281 = vpop.permute.xlu0 %280
    %284 = vrot.lane.b32.xlu0 %v195, 120
    %v285 = vpop.permute.xlu0 %284
    %286 = vrot.lane.b32.xlu0 %v201, 120
    %v287 = vpop.permute.xlu0 %286
    %288 = vrot.lane.b32.xlu0 %v195, 112
    %v289 = vpop.permute.xlu0 %288
    %290 = vrot.lane.b32.xlu0 %v201, 112
    %v291 = vpop.permute.xlu0 %290
    %292 = vrot.lane.b32.xlu0 %v195, 104
    %v293 = vpop.permute.xlu0 %292
    %294 = vrot.lane.b32.xlu0 %v201, 104
    %v295 = vpop.permute.xlu0 %294
    %v296 = vld [vmem:[%s1] sm:$0x1]
    %v297 = vld [vmem:[%s1 + $0x1] sm:$0x1]
    %v298 = vld [vmem:[%s1 + $0x2] sm:$0x1]
    %v299 = vld [vmem:[%s1 + $0x3] sm:$0x1]
    %v300 = vld [vmem:[%s1 + $0x4] sm:$0x1]
    %v301 = vld [vmem:[%s1 + $0x5] sm:$0x1]
    %v302 = vld [vmem:[%s1 + $0x6] sm:$0x1]
    %v303 = vld [vmem:[%s1 + $0x7] sm:$0x1]
    %v312 = vlaneseq
    %v313 = vshrl.u32 %v312, 7
    %v314 = vsub.s32 0, %v313
    %v315 = vrot.slane %v296, %v314
    %v316 = vlaneseq
    %v317 = vshrl.u32 %v316, 7
    %v318 = vsub.s32 0, %v317
    %v319 = vrot.slane %v297, %v318
    %v320 = vlaneseq
    %v321 = vshrl.u32 %v320, 7
    %v322 = vsub.s32 0, %v321
    %v323 = vrot.slane %v298, %v322
    %v324 = vlaneseq
    %v325 = vshrl.u32 %v324, 7
    %v326 = vsub.s32 0, %v325
    %v327 = vrot.slane %v299, %v326
    %v328 = vlaneseq
    %v329 = vshrl.u32 %v328, 7
    %v330 = vsub.s32 0, %v329
    %v331 = vrot.slane %v300, %v330
    %v332 = vlaneseq
    %v333 = vshrl.u32 %v332, 7
    %v334 = vsub.s32 0, %v333
    %v335 = vrot.slane %v301, %v334
    %v336 = vlaneseq
    %v337 = vshrl.u32 %v336, 7
    %v338 = vsub.s32 0, %v337
    %v339 = vrot.slane %v302, %v338
    %v340 = vlaneseq
    %v341 = vshrl.u32 %v340, 7
    %v342 = vsub.s32 0, %v341
    %v343 = vrot.slane %v303, %v342
    %352 = vrot.lane.b32.xlu0 %v252, 96
    %v353 = vpop.permute.xlu0 %352
    %vm354 = vcmask 64512
    %v355 = vsel %vm354, %v230, 0
    %v357 = vsel %vm354, %v353, 0
    %359 = vmatprep.subr.mxu0 0.0
    %360 = vmatpush1.xpose.msra.mxu0 %v357
    %361 = vmatprep.subr.mxu0 0.0
    %362 = vmatpush1.xpose.msra.mxu0 0.0
    %363 = vmatprep.subr.mxu0 0.0
    %364 = vmatpush1.xpose.msra.mxu0 0.0
    %365 = vmatprep.subr.mxu0 0.0
    %366 = vmatpush1.xpose.msra.mxu0 0.0
    %367 = vmatprep.subr.mxu0 0.0
    %368 = vmatpush1.xpose.msra.mxu0 0.0
    %369 = vmatprep.subr.mxu0 0.0
    %370 = vmatpush1.xpose.msra.mxu0 0.0
    %371 = vmatprep.subr.mxu0 0.0
    %372 = vmatpush1.xpose.msra.mxu0 0.0
    %373 = vmatprep.subr.mxu0 0.0
    %374 = vmatpush1.xpose.msra.mxu0 0.0
    %375 = vmatprep.subr.mxu0 0.0
    %376 = vmatpush1.xpose.msra.mxu0 0.0
    %377 = vmatprep.subr.mxu0 0.0
    %378 = vmatpush1.xpose.msra.mxu0 0.0
    %379 = vmatprep.subr.mxu0 0.0
    %380 = vmatpush1.xpose.msra.mxu0 0.0
    %381 = vmatprep.subr.mxu0 0.0
    %382 = vmatpush1.xpose.msra.mxu0 0.0
    %383 = vmatprep.subr.mxu0 0.0
    %384 = vmatpush1.xpose.msra.mxu0 0.0
    %385 = vmatprep.subr.mxu0 0.0
    %386 = vmatpush1.xpose.msra.mxu0 0.0
    %387 = vmatprep.subr.mxu0 0.0
    %388 = vmatpush1.xpose.msra.mxu0 0.0
    %389 = vmatprep.subr.mxu0 0.0
    %390 = vmatpush1.xpose.msra.mxu0 0.0
    %391 = vmatprep.subr.mxu0 0.0
    %392 = vmatpush1.xpose.msra.mxu0 0.0
    %393 = vmatprep.subr.mxu0 0.0
    %394 = vmatpush1.xpose.msra.mxu0 0.0
    %395 = vmatprep.subr.mxu0 0.0
    %396 = vmatpush1.xpose.msra.mxu0 0.0
    %397 = vmatprep.subr.mxu0 0.0
    %398 = vmatpush1.xpose.msra.mxu0 0.0
    %399 = vmatprep.subr.mxu0 0.0
    %400 = vmatpush1.xpose.msra.mxu0 0.0
    %401 = vmatprep.subr.mxu0 0.0
    %402 = vmatpush1.xpose.msra.mxu0 0.0
    %403 = vmatprep.subr.mxu0 0.0
    %404 = vmatpush1.xpose.msra.mxu0 0.0
    %405 = vmatprep.subr.mxu0 0.0
    %406 = vmatpush1.xpose.msra.mxu0 0.0
    %407 = vmatprep.subr.mxu0 0.0
    %408 = vmatpush1.xpose.msra.mxu0 0.0
    %409 = vmatprep.subr.mxu0 0.0
    %410 = vmatpush1.xpose.msra.mxu0 0.0
    %411 = vmatprep.subr.mxu0 0.0
    %412 = vmatpush1.xpose.msra.mxu0 0.0
    %413 = vmatprep.subr.mxu0 0.0
    %414 = vmatpush1.xpose.msra.mxu0 0.0
    %415 = vmatprep.subr.mxu0 0.0
    %416 = vmatpush1.xpose.msra.mxu0 0.0
    %417 = vmatprep.subr.mxu0 0.0
    %418 = vmatpush1.xpose.msra.mxu0 0.0
    %419 = vmatprep.subr.mxu0 0.0
    %420 = vmatpush1.xpose.msra.mxu0 0.0
    %421 = vmatprep.subr.mxu0 0.0
    %422 = vmatpush1.xpose.msra.mxu0 0.0
    %423 = vmatprep.mubr.f32.mxu0 0.0
    %424 = vmatmul.mubr.f32.gmra.mrb[0].mxu0 %v355
    %v425 = vpop.f32.mrb[0].mxu0
    %v426 = vadd.f32 %v315, %v425
    %v427 = vpop.f32.mrb[0].mxu0
    %428 = vdwg.mxu0
    %429 = vrot.lane.b32.xlu0 %v271, 96
    %v430 = vpop.permute.xlu0 %429
    %v431 = vsel %vm354, %v257, 0
    %v433 = vsel %vm354, %v430, 0
    %435 = vmatprep.subr.mxu0 0.0
    %436 = vmatpush1.xpose.msra.mxu0 %v433
    %437 = vmatprep.subr.mxu0 0.0
    %438 = vmatpush1.xpose.msra.mxu0 0.0
    %439 = vmatprep.subr.mxu0 0.0
    %440 = vmatpush1.xpose.msra.mxu0 0.0
    %441 = vmatprep.subr.mxu0 0.0
    %442 = vmatpush1.xpose.msra.mxu0 0.0
    %443 = vmatprep.subr.mxu0 0.0
    %444 = vmatpush1.xpose.msra.mxu0 0.0
    %445 = vmatprep.subr.mxu0 0.0
    %446 = vmatpush1.xpose.msra.mxu0 0.0
    %447 = vmatprep.subr.mxu0 0.0
    %448 = vmatpush1.xpose.msra.mxu0 0.0
    %449 = vmatprep.subr.mxu0 0.0
    %450 = vmatpush1.xpose.msra.mxu0 0.0
    %451 = vmatprep.subr.mxu0 0.0
    %452 = vmatpush1.xpose.msra.mxu0 0.0
    %453 = vmatprep.subr.mxu0 0.0
    %454 = vmatpush1.xpose.msra.mxu0 0.0
    %455 = vmatprep.subr.mxu0 0.0
    %456 = vmatpush1.xpose.msra.mxu0 0.0
    %457 = vmatprep.subr.mxu0 0.0
    %458 = vmatpush1.xpose.msra.mxu0 0.0
    %459 = vmatprep.subr.mxu0 0.0
    %460 = vmatpush1.xpose.msra.mxu0 0.0
    %461 = vmatprep.subr.mxu0 0.0
    %462 = vmatpush1.xpose.msra.mxu0 0.0
    %463 = vmatprep.subr.mxu0 0.0
    %464 = vmatpush1.xpose.msra.mxu0 0.0
    %465 = vmatprep.subr.mxu0 0.0
    %466 = vmatpush1.xpose.msra.mxu0 0.0
    %467 = vmatprep.subr.mxu0 0.0
    %468 = vmatpush1.xpose.msra.mxu0 0.0
    %469 = vmatprep.subr.mxu0 0.0
    %470 = vmatpush1.xpose.msra.mxu0 0.0
    %471 = vmatprep.subr.mxu0 0.0
    %472 = vmatpush1.xpose.msra.mxu0 0.0
    %473 = vmatprep.subr.mxu0 0.0
    %474 = vmatpush1.xpose.msra.mxu0 0.0
    %475 = vmatprep.subr.mxu0 0.0
    %476 = vmatpush1.xpose.msra.mxu0 0.0
    %477 = vmatprep.subr.mxu0 0.0
    %478 = vmatpush1.xpose.msra.mxu0 0.0
    %479 = vmatprep.subr.mxu0 0.0
    %480 = vmatpush1.xpose.msra.mxu0 0.0
    %481 = vmatprep.subr.mxu0 0.0
    %482 = vmatpush1.xpose.msra.mxu0 0.0
    %483 = vmatprep.subr.mxu0 0.0
    %484 = vmatpush1.xpose.msra.mxu0 0.0
    %485 = vmatprep.subr.mxu0 0.0
    %486 = vmatpush1.xpose.msra.mxu0 0.0
    %487 = vmatprep.subr.mxu0 0.0
    %488 = vmatpush1.xpose.msra.mxu0 0.0
    %489 = vmatprep.subr.mxu0 0.0
    %490 = vmatpush1.xpose.msra.mxu0 0.0
    %491 = vmatprep.subr.mxu0 0.0
    %492 = vmatpush1.xpose.msra.mxu0 0.0
    %493 = vmatprep.subr.mxu0 0.0
    %494 = vmatpush1.xpose.msra.mxu0 0.0
    %495 = vmatprep.subr.mxu0 0.0
    %496 = vmatpush1.xpose.msra.mxu0 0.0
    %497 = vmatprep.subr.mxu0 0.0
    %498 = vmatpush1.xpose.msra.mxu0 0.0
    %499 = vmatprep.mubr.f32.mxu0 0.0
    %500 = vmatmul.mubr.f32.gmra.mrb[0].mxu0 %v431
    %v501 = vpop.f32.mrb[0].mxu0
    %v502 = vadd.f32 %v319, %v501
    %v503 = vpop.f32.mrb[0].mxu0
    %504 = vdwg.mxu0
    %505 = vrot.lane.b32.xlu0 %v275, 96
    %v506 = vpop.permute.xlu0 %505
    %v507 = vsel %vm354, %v261, 0
    %v509 = vsel %vm354, %v506, 0
    %511 = vmatprep.subr.mxu0 0.0
    %512 = vmatpush1.xpose.msra.mxu0 %v509
    %513 = vmatprep.subr.mxu0 0.0
    %514 = vmatpush1.xpose.msra.mxu0 0.0
    %515 = vmatprep.subr.mxu0 0.0
    %516 = vmatpush1.xpose.msra.mxu0 0.0
    %517 = vmatprep.subr.mxu0 0.0
    %518 = vmatpush1.xpose.msra.mxu0 0.0
    %519 = vmatprep.subr.mxu0 0.0
    %520 = vmatpush1.xpose.msra.mxu0 0.0
    %521 = vmatprep.subr.mxu0 0.0
    %522 = vmatpush1.xpose.msra.mxu0 0.0
    %523 = vmatprep.subr.mxu0 0.0
    %524 = vmatpush1.xpose.msra.mxu0 0.0
    %525 = vmatprep.subr.mxu0 0.0
    %526 = vmatpush1.xpose.msra.mxu0 0.0
    %527 = vmatprep.subr.mxu0 0.0
    %528 = vmatpush1.xpose.msra.mxu0 0.0
    %529 = vmatprep.subr.mxu0 0.0
    %530 = vmatpush1.xpose.msra.mxu0 0.0
    %531 = vmatprep.subr.mxu0 0.0
    %532 = vmatpush1.xpose.msra.mxu0 0.0
    %533 = vmatprep.subr.mxu0 0.0
    %534 = vmatpush1.xpose.msra.mxu0 0.0
    %535 = vmatprep.subr.mxu0 0.0
    %536 = vmatpush1.xpose.msra.mxu0 0.0
    %537 = vmatprep.subr.mxu0 0.0
    %538 = vmatpush1.xpose.msra.mxu0 0.0
    %539 = vmatprep.subr.mxu0 0.0
    %540 = vmatpush1.xpose.msra.mxu0 0.0
    %541 = vmatprep.subr.mxu0 0.0
    %542 = vmatpush1.xpose.msra.mxu0 0.0
    %543 = vmatprep.subr.mxu0 0.0
    %544 = vmatpush1.xpose.msra.mxu0 0.0
    %545 = vmatprep.subr.mxu0 0.0
    %546 = vmatpush1.xpose.msra.mxu0 0.0
    %547 = vmatprep.subr.mxu0 0.0
    %548 = vmatpush1.xpose.msra.mxu0 0.0
    %549 = vmatprep.subr.mxu0 0.0
    %550 = vmatpush1.xpose.msra.mxu0 0.0
    %551 = vmatprep.subr.mxu0 0.0
    %552 = vmatpush1.xpose.msra.mxu0 0.0
    %553 = vmatprep.subr.mxu0 0.0
    %554 = vmatpush1.xpose.msra.mxu0 0.0
    %555 = vmatprep.subr.mxu0 0.0
    %556 = vmatpush1.xpose.msra.mxu0 0.0
    %557 = vmatprep.subr.mxu0 0.0
    %558 = vmatpush1.xpose.msra.mxu0 0.0
    %559 = vmatprep.subr.mxu0 0.0
    %560 = vmatpush1.xpose.msra.mxu0 0.0
    %561 = vmatprep.subr.mxu0 0.0
    %562 = vmatpush1.xpose.msra.mxu0 0.0
    %563 = vmatprep.subr.mxu0 0.0
    %564 = vmatpush1.xpose.msra.mxu0 0.0
    %565 = vmatprep.subr.mxu0 0.0
    %566 = vmatpush1.xpose.msra.mxu0 0.0
    %567 = vmatprep.subr.mxu0 0.0
    %568 = vmatpush1.xpose.msra.mxu0 0.0
    %569 = vmatprep.subr.mxu0 0.0
    %570 = vmatpush1.xpose.msra.mxu0 0.0
    %571 = vmatprep.subr.mxu0 0.0
    %572 = vmatpush1.xpose.msra.mxu0 0.0
    %573 = vmatprep.subr.mxu0 0.0
    %574 = vmatpush1.xpose.msra.mxu0 0.0
    %575 = vmatprep.mubr.f32.mxu0 0.0
    %576 = vmatmul.mubr.f32.gmra.mrb[0].mxu0 %v507
    %v577 = vpop.f32.mrb[0].mxu0
    %v578 = vadd.f32 %v323, %v577
    %v579 = vpop.f32.mrb[0].mxu0
    %580 = vdwg.mxu0
    %581 = vrot.lane.b32.xlu0 %v279, 96
    %v582 = vpop.permute.xlu0 %581
    %v583 = vsel %vm354, %v265, 0
    %v585 = vsel %vm354, %v582, 0
    %587 = vmatprep.subr.mxu0 0.0
    %588 = vmatpush1.xpose.msra.mxu0 %v585
    %589 = vmatprep.subr.mxu0 0.0
    %590 = vmatpush1.xpose.msra.mxu0 0.0
    %591 = vmatprep.subr.mxu0 0.0
    %592 = vmatpush1.xpose.msra.mxu0 0.0
    %593 = vmatprep.subr.mxu0 0.0
    %594 = vmatpush1.xpose.msra.mxu0 0.0
    %595 = vmatprep.subr.mxu0 0.0
    %596 = vmatpush1.xpose.msra.mxu0 0.0
    %597 = vmatprep.subr.mxu0 0.0
    %598 = vmatpush1.xpose.msra.mxu0 0.0
    %599 = vmatprep.subr.mxu0 0.0
    %600 = vmatpush1.xpose.msra.mxu0 0.0
    %601 = vmatprep.subr.mxu0 0.0
    %602 = vmatpush1.xpose.msra.mxu0 0.0
    %603 = vmatprep.subr.mxu0 0.0
    %604 = vmatpush1.xpose.msra.mxu0 0.0
    %605 = vmatprep.subr.mxu0 0.0
    %606 = vmatpush1.xpose.msra.mxu0 0.0
    %607 = vmatprep.subr.mxu0 0.0
    %608 = vmatpush1.xpose.msra.mxu0 0.0
    %609 = vmatprep.subr.mxu0 0.0
    %610 = vmatpush1.xpose.msra.mxu0 0.0
    %611 = vmatprep.subr.mxu0 0.0
    %612 = vmatpush1.xpose.msra.mxu0 0.0
    %613 = vmatprep.subr.mxu0 0.0
    %614 = vmatpush1.xpose.msra.mxu0 0.0
    %615 = vmatprep.subr.mxu0 0.0
    %616 = vmatpush1.xpose.msra.mxu0 0.0
    %617 = vmatprep.subr.mxu0 0.0
    %618 = vmatpush1.xpose.msra.mxu0 0.0
    %619 = vmatprep.subr.mxu0 0.0
    %620 = vmatpush1.xpose.msra.mxu0 0.0
    %621 = vmatprep.subr.mxu0 0.0
    %622 = vmatpush1.xpose.msra.mxu0 0.0
    %623 = vmatprep.subr.mxu0 0.0
    %624 = vmatpush1.xpose.msra.mxu0 0.0
    %625 = vmatprep.subr.mxu0 0.0
    %626 = vmatpush1.xpose.msra.mxu0 0.0
    %627 = vmatprep.subr.mxu0 0.0
    %628 = vmatpush1.xpose.msra.mxu0 0.0
    %629 = vmatprep.subr.mxu0 0.0
    %630 = vmatpush1.xpose.msra.mxu0 0.0
    %631 = vmatprep.subr.mxu0 0.0
    %632 = vmatpush1.xpose.msra.mxu0 0.0
    %633 = vmatprep.subr.mxu0 0.0
    %634 = vmatpush1.xpose.msra.mxu0 0.0
    %635 = vmatprep.subr.mxu0 0.0
    %636 = vmatpush1.xpose.msra.mxu0 0.0
    %637 = vmatprep.subr.mxu0 0.0
    %638 = vmatpush1.xpose.msra.mxu0 0.0
    %639 = vmatprep.subr.mxu0 0.0
    %640 = vmatpush1.xpose.msra.mxu0 0.0
    %641 = vmatprep.subr.mxu0 0.0
    %642 = vmatpush1.xpose.msra.mxu0 0.0
    %643 = vmatprep.subr.mxu0 0.0
    %644 = vmatpush1.xpose.msra.mxu0 0.0
    %645 = vmatprep.subr.mxu0 0.0
    %646 = vmatpush1.xpose.msra.mxu0 0.0
    %647 = vmatprep.subr.mxu0 0.0
    %648 = vmatpush1.xpose.msra.mxu0 0.0
    %649 = vmatprep.subr.mxu0 0.0
    %650 = vmatpush1.xpose.msra.mxu0 0.0
    %651 = vmatprep.mubr.f32.mxu0 0.0
    %652 = vmatmul.mubr.f32.gmra.mrb[0].mxu0 %v583
    %v653 = vpop.f32.mrb[0].mxu0
    %v654 = vadd.f32 %v327, %v653
    %v655 = vpop.f32.mrb[0].mxu0
    %656 = vdwg.mxu0
    %657 = vrot.lane.b32.xlu0 %v253, 96
    %v658 = vpop.permute.xlu0 %657
    %v659 = vsel %vm354, %v231, 0
    %v661 = vsel %vm354, %v658, 0
    %663 = vmatprep.subr.mxu0 0.0
    %664 = vmatpush1.xpose.msra.mxu0 %v661
    %665 = vmatprep.subr.mxu0 0.0
    %666 = vmatpush1.xpose.msra.mxu0 0.0
    %667 = vmatprep.subr.mxu0 0.0
    %668 = vmatpush1.xpose.msra.mxu0 0.0
    %669 = vmatprep.subr.mxu0 0.0
    %670 = vmatpush1.xpose.msra.mxu0 0.0
    %671 = vmatprep.subr.mxu0 0.0
    %672 = vmatpush1.xpose.msra.mxu0 0.0
    %673 = vmatprep.subr.mxu0 0.0
    %674 = vmatpush1.xpose.msra.mxu0 0.0
    %675 = vmatprep.subr.mxu0 0.0
    %676 = vmatpush1.xpose.msra.mxu0 0.0
    %677 = vmatprep.subr.mxu0 0.0
    %678 = vmatpush1.xpose.msra.mxu0 0.0
    %679 = vmatprep.subr.mxu0 0.0
    %680 = vmatpush1.xpose.msra.mxu0 0.0
    %681 = vmatprep.subr.mxu0 0.0
    %682 = vmatpush1.xpose.msra.mxu0 0.0
    %683 = vmatprep.subr.mxu0 0.0
    %684 = vmatpush1.xpose.msra.mxu0 0.0
    %685 = vmatprep.subr.mxu0 0.0
    %686 = vmatpush1.xpose.msra.mxu0 0.0
    %687 = vmatprep.subr.mxu0 0.0
    %688 = vmatpush1.xpose.msra.mxu0 0.0
    %689 = vmatprep.subr.mxu0 0.0
    %690 = vmatpush1.xpose.msra.mxu0 0.0
    %691 = vmatprep.subr.mxu0 0.0
    %692 = vmatpush1.xpose.msra.mxu0 0.0
    %693 = vmatprep.subr.mxu0 0.0
    %694 = vmatpush1.xpose.msra.mxu0 0.0
    %695 = vmatprep.subr.mxu0 0.0
    %696 = vmatpush1.xpose.msra.mxu0 0.0
    %697 = vmatprep.subr.mxu0 0.0
    %698 = vmatpush1.xpose.msra.mxu0 0.0
    %699 = vmatprep.subr.mxu0 0.0
    %700 = vmatpush1.xpose.msra.mxu0 0.0
    %701 = vmatprep.subr.mxu0 0.0
    %702 = vmatpush1.xpose.msra.mxu0 0.0
    %703 = vmatprep.subr.mxu0 0.0
    %704 = vmatpush1.xpose.msra.mxu0 0.0
    %705 = vmatprep.subr.mxu0 0.0
    %706 = vmatpush1.xpose.msra.mxu0 0.0
    %707 = vmatprep.subr.mxu0 0.0
    %708 = vmatpush1.xpose.msra.mxu0 0.0
    %709 = vmatprep.subr.mxu0 0.0
    %710 = vmatpush1.xpose.msra.mxu0 0.0
    %711 = vmatprep.subr.mxu0 0.0
    %712 = vmatpush1.xpose.msra.mxu0 0.0
    %713 = vmatprep.subr.mxu0 0.0
    %714 = vmatpush1.xpose.msra.mxu0 0.0
    %715 = vmatprep.subr.mxu0 0.0
    %716 = vmatpush1.xpose.msra.mxu0 0.0
    %717 = vmatprep.subr.mxu0 0.0
    %718 = vmatpush1.xpose.msra.mxu0 0.0
    %719 = vmatprep.subr.mxu0 0.0
    %720 = vmatpush1.xpose.msra.mxu0 0.0
    %721 = vmatprep.subr.mxu0 0.0
    %722 = vmatpush1.xpose.msra.mxu0 0.0
    %723 = vmatprep.subr.mxu0 0.0
    %724 = vmatpush1.xpose.msra.mxu0 0.0
    %725 = vmatprep.subr.mxu0 0.0
    %726 = vmatpush1.xpose.msra.mxu0 0.0
    %727 = vmatprep.mubr.f32.mxu0 0.0
    %728 = vmatmul.mubr.f32.gmra.mrb[0].mxu0 %v659
    %v729 = vpop.f32.mrb[0].mxu0
    %v730 = vadd.f32 %v331, %v729
    %v731 = vpop.f32.mrb[0].mxu0
    %732 = vdwg.mxu0
    %733 = vrot.lane.b32.xlu0 %v273, 96
    %v734 = vpop.permute.xlu0 %733
    %v735 = vsel %vm354, %v259, 0
    %v737 = vsel %vm354, %v734, 0
    %739 = vmatprep.subr.mxu0 0.0
    %740 = vmatpush1.xpose.msra.mxu0 %v737
    %741 = vmatprep.subr.mxu0 0.0
    %742 = vmatpush1.xpose.msra.mxu0 0.0
    %743 = vmatprep.subr.mxu0 0.0
    %744 = vmatpush1.xpose.msra.mxu0 0.0
    %745 = vmatprep.subr.mxu0 0.0
    %746 = vmatpush1.xpose.msra.mxu0 0.0
    %747 = vmatprep.subr.mxu0 0.0
    %748 = vmatpush1.xpose.msra.mxu0 0.0
    %749 = vmatprep.subr.mxu0 0.0
    %750 = vmatpush1.xpose.msra.mxu0 0.0
    %751 = vmatprep.subr.mxu0 0.0
    %752 = vmatpush1.xpose.msra.mxu0 0.0
    %753 = vmatprep.subr.mxu0 0.0
    %754 = vmatpush1.xpose.msra.mxu0 0.0
    %755 = vmatprep.subr.mxu0 0.0
    %756 = vmatpush1.xpose.msra.mxu0 0.0
    %757 = vmatprep.subr.mxu0 0.0
    %758 = vmatpush1.xpose.msra.mxu0 0.0
    %759 = vmatprep.subr.mxu0 0.0
    %760 = vmatpush1.xpose.msra.mxu0 0.0
    %761 = vmatprep.subr.mxu0 0.0
    %762 = vmatpush1.xpose.msra.mxu0 0.0
    %763 = vmatprep.subr.mxu0 0.0
    %764 = vmatpush1.xpose.msra.mxu0 0.0
    %765 = vmatprep.subr.mxu0 0.0
    %766 = vmatpush1.xpose.msra.mxu0 0.0
    %767 = vmatprep.subr.mxu0 0.0
    %768 = vmatpush1.xpose.msra.mxu0 0.0
    %769 = vmatprep.subr.mxu0 0.0
    %770 = vmatpush1.xpose.msra.mxu0 0.0
    %771 = vmatprep.subr.mxu0 0.0
    %772 = vmatpush1.xpose.msra.mxu0 0.0
    %773 = vmatprep.subr.mxu0 0.0
    %774 = vmatpush1.xpose.msra.mxu0 0.0
    %775 = vmatprep.subr.mxu0 0.0
    %776 = vmatpush1.xpose.msra.mxu0 0.0
    %777 = vmatprep.subr.mxu0 0.0
    %778 = vmatpush1.xpose.msra.mxu0 0.0
    %779 = vmatprep.subr.mxu0 0.0
    %780 = vmatpush1.xpose.msra.mxu0 0.0
    %781 = vmatprep.subr.mxu0 0.0
    %782 = vmatpush1.xpose.msra.mxu0 0.0
    %783 = vmatprep.subr.mxu0 0.0
    %784 = vmatpush1.xpose.msra.mxu0 0.0
    %785 = vmatprep.subr.mxu0 0.0
    %786 = vmatpush1.xpose.msra.mxu0 0.0
    %787 = vmatprep.subr.mxu0 0.0
    %788 = vmatpush1.xpose.msra.mxu0 0.0
    %789 = vmatprep.subr.mxu0 0.0
    %790 = vmatpush1.xpose.msra.mxu0 0.0
    %791 = vmatprep.subr.mxu0 0.0
    %792 = vmatpush1.xpose.msra.mxu0 0.0
    %793 = vmatprep.subr.mxu0 0.0
    %794 = vmatpush1.xpose.msra.mxu0 0.0
    %795 = vmatprep.subr.mxu0 0.0
    %796 = vmatpush1.xpose.msra.mxu0 0.0
    %797 = vmatprep.subr.mxu0 0.0
    %798 = vmatpush1.xpose.msra.mxu0 0.0
    %799 = vmatprep.subr.mxu0 0.0
    %800 = vmatpush1.xpose.msra.mxu0 0.0
    %801 = vmatprep.subr.mxu0 0.0
    %802 = vmatpush1.xpose.msra.mxu0 0.0
    %803 = vmatprep.mubr.f32.mxu0 0.0
    %804 = vmatmul.mubr.f32.gmra.mrb[0].mxu0 %v735
    %v805 = vpop.f32.mrb[0].mxu0
    %v806 = vadd.f32 %v335, %v805
    %v807 = vpop.f32.mrb[0].mxu0
    %808 = vdwg.mxu0
    %809 = vrot.lane.b32.xlu0 %v277, 96
    %v810 = vpop.permute.xlu0 %809
    %v811 = vsel %vm354, %v263, 0
    %v813 = vsel %vm354, %v810, 0
    %815 = vmatprep.subr.mxu0 0.0
    %816 = vmatpush1.xpose.msra.mxu0 %v813
    %817 = vmatprep.subr.mxu0 0.0
    %818 = vmatpush1.xpose.msra.mxu0 0.0
    %819 = vmatprep.subr.mxu0 0.0
    %820 = vmatpush1.xpose.msra.mxu0 0.0
    %821 = vmatprep.subr.mxu0 0.0
    %822 = vmatpush1.xpose.msra.mxu0 0.0
    %823 = vmatprep.subr.mxu0 0.0
    %824 = vmatpush1.xpose.msra.mxu0 0.0
    %825 = vmatprep.subr.mxu0 0.0
    %826 = vmatpush1.xpose.msra.mxu0 0.0
    %827 = vmatprep.subr.mxu0 0.0
    %828 = vmatpush1.xpose.msra.mxu0 0.0
    %829 = vmatprep.subr.mxu0 0.0
    %830 = vmatpush1.xpose.msra.mxu0 0.0
    %831 = vmatprep.subr.mxu0 0.0
    %832 = vmatpush1.xpose.msra.mxu0 0.0
    %833 = vmatprep.subr.mxu0 0.0
    %834 = vmatpush1.xpose.msra.mxu0 0.0
    %835 = vmatprep.subr.mxu0 0.0
    %836 = vmatpush1.xpose.msra.mxu0 0.0
    %837 = vmatprep.subr.mxu0 0.0
    %838 = vmatpush1.xpose.msra.mxu0 0.0
    %839 = vmatprep.subr.mxu0 0.0
    %840 = vmatpush1.xpose.msra.mxu0 0.0
    %841 = vmatprep.subr.mxu0 0.0
    %842 = vmatpush1.xpose.msra.mxu0 0.0
    %843 = vmatprep.subr.mxu0 0.0
    %844 = vmatpush1.xpose.msra.mxu0 0.0
    %845 = vmatprep.subr.mxu0 0.0
    %846 = vmatpush1.xpose.msra.mxu0 0.0
    %847 = vmatprep.subr.mxu0 0.0
    %848 = vmatpush1.xpose.msra.mxu0 0.0
    %849 = vmatprep.subr.mxu0 0.0
    %850 = vmatpush1.xpose.msra.mxu0 0.0
    %851 = vmatprep.subr.mxu0 0.0
    %852 = vmatpush1.xpose.msra.mxu0 0.0
    %853 = vmatprep.subr.mxu0 0.0
    %854 = vmatpush1.xpose.msra.mxu0 0.0
    %855 = vmatprep.subr.mxu0 0.0
    %856 = vmatpush1.xpose.msra.mxu0 0.0
    %857 = vmatprep.subr.mxu0 0.0
    %858 = vmatpush1.xpose.msra.mxu0 0.0
    %859 = vmatprep.subr.mxu0 0.0
    %860 = vmatpush1.xpose.msra.mxu0 0.0
    %861 = vmatprep.subr.mxu0 0.0
    %862 = vmatpush1.xpose.msra.mxu0 0.0
    %863 = vmatprep.subr.mxu0 0.0
    %864 = vmatpush1.xpose.msra.mxu0 0.0
    %865 = vmatprep.subr.mxu0 0.0
    %866 = vmatpush1.xpose.msra.mxu0 0.0
    %867 = vmatprep.subr.mxu0 0.0
    %868 = vmatpush1.xpose.msra.mxu0 0.0
    %869 = vmatprep.subr.mxu0 0.0
    %870 = vmatpush1.xpose.msra.mxu0 0.0
    %871 = vmatprep.subr.mxu0 0.0
    %872 = vmatpush1.xpose.msra.mxu0 0.0
    %873 = vmatprep.subr.mxu0 0.0
    %874 = vmatpush1.xpose.msra.mxu0 0.0
    %875 = vmatprep.subr.mxu0 0.0
    %876 = vmatpush1.xpose.msra.mxu0 0.0
    %877 = vmatprep.subr.mxu0 0.0
    %878 = vmatpush1.xpose.msra.mxu0 0.0
    %879 = vmatprep.mubr.f32.mxu0 0.0
    %880 = vmatmul.mubr.f32.gmra.mrb[0].mxu0 %v811
    %v881 = vpop.f32.mrb[0].mxu0
    %v882 = vadd.f32 %v339, %v881
    %v883 = vpop.f32.mrb[0].mxu0
    %884 = vdwg.mxu0
    %885 = vrot.lane.b32.xlu0 %v281, 96
    %v886 = vpop.permute.xlu0 %885
    %v887 = vsel %vm354, %v267, 0
    %v889 = vsel %vm354, %v886, 0
    %891 = vmatprep.subr.mxu0 0.0
    %892 = vmatpush1.xpose.msra.mxu0 %v889
    %893 = vmatprep.subr.mxu0 0.0
    %894 = vmatpush1.xpose.msra.mxu0 0.0
    %895 = vmatprep.subr.mxu0 0.0
    %896 = vmatpush1.xpose.msra.mxu0 0.0
    %897 = vmatprep.subr.mxu0 0.0
    %898 = vmatpush1.xpose.msra.mxu0 0.0
    %899 = vmatprep.subr.mxu0 0.0
    %900 = vmatpush1.xpose.msra.mxu0 0.0
    %901 = vmatprep.subr.mxu0 0.0
    %902 = vmatpush1.xpose.msra.mxu0 0.0
    %903 = vmatprep.subr.mxu0 0.0
    %904 = vmatpush1.xpose.msra.mxu0 0.0
    %905 = vmatprep.subr.mxu0 0.0
    %906 = vmatpush1.xpose.msra.mxu0 0.0
    %907 = vmatprep.subr.mxu0 0.0
    %908 = vmatpush1.xpose.msra.mxu0 0.0
    %909 = vmatprep.subr.mxu0 0.0
    %910 = vmatpush1.xpose.msra.mxu0 0.0
    %911 = vmatprep.subr.mxu0 0.0
    %912 = vmatpush1.xpose.msra.mxu0 0.0
    %913 = vmatprep.subr.mxu0 0.0
    %914 = vmatpush1.xpose.msra.mxu0 0.0
    %915 = vmatprep.subr.mxu0 0.0
    %916 = vmatpush1.xpose.msra.mxu0 0.0
    %917 = vmatprep.subr.mxu0 0.0
    %918 = vmatpush1.xpose.msra.mxu0 0.0
    %919 = vmatprep.subr.mxu0 0.0
    %920 = vmatpush1.xpose.msra.mxu0 0.0
    %921 = vmatprep.subr.mxu0 0.0
    %922 = vmatpush1.xpose.msra.mxu0 0.0
    %923 = vmatprep.subr.mxu0 0.0
    %924 = vmatpush1.xpose.msra.mxu0 0.0
    %925 = vmatprep.subr.mxu0 0.0
    %926 = vmatpush1.xpose.msra.mxu0 0.0
    %927 = vmatprep.subr.mxu0 0.0
    %928 = vmatpush1.xpose.msra.mxu0 0.0
    %929 = vmatprep.subr.mxu0 0.0
    %930 = vmatpush1.xpose.msra.mxu0 0.0
    %931 = vmatprep.subr.mxu0 0.0
    %932 = vmatpush1.xpose.msra.mxu0 0.0
    %933 = vmatprep.subr.mxu0 0.0
    %934 = vmatpush1.xpose.msra.mxu0 0.0
    %935 = vmatprep.subr.mxu0 0.0
    %936 = vmatpush1.xpose.msra.mxu0 0.0
    %937 = vmatprep.subr.mxu0 0.0
    %938 = vmatpush1.xpose.msra.mxu0 0.0
    %939 = vmatprep.subr.mxu0 0.0
    %940 = vmatpush1.xpose.msra.mxu0 0.0
    %941 = vmatprep.subr.mxu0 0.0
    %942 = vmatpush1.xpose.msra.mxu0 0.0
    %943 = vmatprep.subr.mxu0 0.0
    %944 = vmatpush1.xpose.msra.mxu0 0.0
    %945 = vmatprep.subr.mxu0 0.0
    %946 = vmatpush1.xpose.msra.mxu0 0.0
    %947 = vmatprep.subr.mxu0 0.0
    %948 = vmatpush1.xpose.msra.mxu0 0.0
    %949 = vmatprep.subr.mxu0 0.0
    %950 = vmatpush1.xpose.msra.mxu0 0.0
    %951 = vmatprep.subr.mxu0 0.0
    %952 = vmatpush1.xpose.msra.mxu0 0.0
    %953 = vmatprep.subr.mxu0 0.0
    %954 = vmatpush1.xpose.msra.mxu0 0.0
    %955 = vmatprep.mubr.f32.mxu0 0.0
    %956 = vmatmul.mubr.f32.gmra.mrb[0].mxu0 %v887
    %v957 = vpop.f32.mrb[0].mxu0
    %v958 = vadd.f32 %v343, %v957
    %v959 = vpop.f32.mrb[0].mxu0
    %960 = vdwg.mxu0
    %v961 = vsel %vm354, %v426, -inf
    %962 = vmax.xlane.f32.xlu0 %v961
    %v963 = vpop.xlane.xlu0 %962
    %v964 = vsel %vm354, %v502, -inf
    %965 = vmax.xlane.f32.xlu0 %v964
    %v966 = vpop.xlane.xlu0 %965
    %v967 = vsel %vm354, %v578, -inf
    %968 = vmax.xlane.f32.xlu0 %v967
    %v969 = vpop.xlane.xlu0 %968
    %v970 = vsel %vm354, %v654, -inf
    %971 = vmax.xlane.f32.xlu0 %v970
    %v972 = vpop.xlane.xlu0 %971
    %v973 = vsel %vm354, %v730, -inf
    %974 = vmax.xlane.f32.xlu0 %v973
    %v975 = vpop.xlane.xlu0 %974
    %v976 = vsel %vm354, %v806, -inf
    %977 = vmax.xlane.f32.xlu0 %v976
    %v978 = vpop.xlane.xlu0 %977
    %v979 = vsel %vm354, %v882, -inf
    %980 = vmax.xlane.f32.xlu0 %v979
    %v981 = vpop.xlane.xlu0 %980
    %v982 = vsel %vm354, %v958, -inf
    %983 = vmax.xlane.f32.xlu0 %v982
    %v984 = vpop.xlane.xlu0 %983
    %v985 = vsub.f32 %v426, %v963
    %v986 = vsub.f32 %v502, %v966
    %v987 = vsub.f32 %v578, %v969
    %v988 = vsub.f32 %v654, %v972
    %v989 = vsub.f32 %v730, %v975
    %v990 = vsub.f32 %v806, %v978
    %v991 = vsub.f32 %v882, %v981
    %v992 = vsub.f32 %v958, %v984
    %v993 = vmul.f32 %v985, 1.442695
    %v994 = vpow.pop %v993
    %v995 = vmul.f32 %v986, 1.442695
    %v996 = vpow.pop %v995
    %v997 = vmul.f32 %v987, 1.442695
    %v998 = vpow.pop %v997
    %v999 = vmul.f32 %v988, 1.442695
    %v1000 = vpow.pop %v999
    %v1001 = vmul.f32 %v989, 1.442695
    %v1002 = vpow.pop %v1001
    %v1003 = vmul.f32 %v990, 1.442695
    %v1004 = vpow.pop %v1003
    %v1005 = vmul.f32 %v991, 1.442695
    %v1006 = vpow.pop %v1005
    %v1007 = vmul.f32 %v992, 1.442695
    %v1008 = vpow.pop %v1007
    %v1009 = vsel %vm354, %v994, 0.0
    %1010 = vadd.xlane.f32.xlu0 %v1009
    %v1011 = vpop.xlane.xlu0 %1010
    %v1012 = vsel %vm354, %v996, 0.0
    %1013 = vadd.xlane.f32.xlu0 %v1012
    %v1014 = vpop.xlane.xlu0 %1013
    %v1015 = vsel %vm354, %v998, 0.0
    %1016 = vadd.xlane.f32.xlu0 %v1015
    %v1017 = vpop.xlane.xlu0 %1016
    %v1018 = vsel %vm354, %v1000, 0.0
    %1019 = vadd.xlane.f32.xlu0 %v1018
    %v1020 = vpop.xlane.xlu0 %1019
    %v1021 = vsel %vm354, %v1002, 0.0
    %1022 = vadd.xlane.f32.xlu0 %v1021
    %v1023 = vpop.xlane.xlu0 %1022
    %v1024 = vsel %vm354, %v1004, 0.0
    %1025 = vadd.xlane.f32.xlu0 %v1024
    %v1026 = vpop.xlane.xlu0 %1025
    %v1027 = vsel %vm354, %v1006, 0.0
    %1028 = vadd.xlane.f32.xlu0 %v1027
    %v1029 = vpop.xlane.xlu0 %1028
    %v1030 = vsel %vm354, %v1008, 0.0
    %1031 = vadd.xlane.f32.xlu0 %v1030
    %v1032 = vpop.xlane.xlu0 %1031
    %v1033 = vrcp.pop %v1011
    %v1034 = vrcp.pop %v1014
    %v1035 = vrcp.pop %v1017
    %v1036 = vrcp.pop %v1020
    %v1037 = vrcp.pop %v1023
    %v1038 = vrcp.pop %v1026
    %v1039 = vrcp.pop %v1029
    %v1040 = vrcp.pop %v1032
    %v1041 = vmul.f32 %v994, %v1033
    %v1042 = vmul.f32 %v996, %v1034
    %v1043 = vmul.f32 %v998, %v1035
    %v1044 = vmul.f32 %v1000, %v1036
    %v1045 = vmul.f32 %v1002, %v1037
    %v1046 = vmul.f32 %v1004, %v1038
    %v1047 = vmul.f32 %v1006, %v1039
    %v1048 = vmul.f32 %v1008, %v1040
    %1049 = vrot.lane.b32.xlu0 %v195, 64
    %v1050 = vpop.permute.xlu0 %1049
    %v1053 = vsel %vm354, %v1041, 0
    %1055 = vmatprep.subr.mxu0 0.0
    %1056 = vmatpush1.msra.mxu0 %v1050
    %1057 = vmatprep.subr.mxu0 0.0
    %1058 = vmatpush1.msra.mxu0 0.0
    %1059 = vmatprep.subr.mxu0 0.0
    %1060 = vmatpush1.msra.mxu0 0.0
    %1061 = vmatprep.subr.mxu0 0.0
    %1062 = vmatpush1.msra.mxu0 0.0
    %1063 = vmatprep.subr.mxu0 0.0
    %1064 = vmatpush1.msra.mxu0 0.0
    %1065 = vmatprep.subr.mxu0 0.0
    %1066 = vmatpush1.msra.mxu0 0.0
    %1067 = vmatprep.subr.mxu0 0.0
    %1068 = vmatpush1.msra.mxu0 0.0
    %1069 = vmatprep.subr.mxu0 0.0
    %1070 = vmatpush1.msra.mxu0 0.0
    %1071 = vmatprep.subr.mxu0 0.0
    %1072 = vmatpush1.msra.mxu0 0.0
    %1073 = vmatprep.subr.mxu0 0.0
    %1074 = vmatpush1.msra.mxu0 0.0
    %1075 = vmatprep.subr.mxu0 0.0
    %1076 = vmatpush1.msra.mxu0 0.0
    %1077 = vmatprep.subr.mxu0 0.0
    %1078 = vmatpush1.msra.mxu0 0.0
    %1079 = vmatprep.subr.mxu0 0.0
    %1080 = vmatpush1.msra.mxu0 0.0
    %1081 = vmatprep.subr.mxu0 0.0
    %1082 = vmatpush1.msra.mxu0 0.0
    %1083 = vmatprep.subr.mxu0 0.0
    %1084 = vmatpush1.msra.mxu0 0.0
    %1085 = vmatprep.subr.mxu0 0.0
    %1086 = vmatpush1.msra.mxu0 0.0
    %1087 = vmatprep.subr.mxu0 0.0
    %1088 = vmatpush1.msra.mxu0 0.0
    %1089 = vmatprep.subr.mxu0 0.0
    %1090 = vmatpush1.msra.mxu0 0.0
    %1091 = vmatprep.subr.mxu0 0.0
    %1092 = vmatpush1.msra.mxu0 0.0
    %1093 = vmatprep.subr.mxu0 0.0
    %1094 = vmatpush1.msra.mxu0 0.0
    %1095 = vmatprep.subr.mxu0 0.0
    %1096 = vmatpush1.msra.mxu0 0.0
    %1097 = vmatprep.subr.mxu0 0.0
    %1098 = vmatpush1.msra.mxu0 0.0
    %1099 = vmatprep.subr.mxu0 0.0
    %1100 = vmatpush1.msra.mxu0 0.0
    %1101 = vmatprep.subr.mxu0 0.0
    %1102 = vmatpush1.msra.mxu0 0.0
    %1103 = vmatprep.subr.mxu0 0.0
    %1104 = vmatpush1.msra.mxu0 0.0
    %1105 = vmatprep.subr.mxu0 0.0
    %1106 = vmatpush1.msra.mxu0 0.0
    %1107 = vmatprep.subr.mxu0 0.0
    %1108 = vmatpush1.msra.mxu0 0.0
    %1109 = vmatprep.subr.mxu0 0.0
    %1110 = vmatpush1.msra.mxu0 0.0
    %1111 = vmatprep.subr.mxu0 0.0
    %1112 = vmatpush1.msra.mxu0 0.0
    %1113 = vmatprep.subr.mxu0 0.0
    %1114 = vmatpush1.msra.mxu0 0.0
    %1115 = vmatprep.subr.mxu0 0.0
    %1116 = vmatpush1.msra.mxu0 0.0
    %1117 = vmatprep.subr.mxu0 0.0
    %1118 = vmatpush1.msra.mxu0 0.0
    %1119 = vmatprep.mubr.f32.mxu0 0.0
    %1120 = vmatmul.mubr.f32.gmra.mrb[0].mxu0 %v1053
    %v1121 = vpop.f32.mrb[0].mxu0
    %v1122 = vadd.f32 0.0, %v1121
    %v1123 = vpop.f32.mrb[0].mxu0
    %1124 = vdwg.mxu0
    %1125 = vrot.lane.b32.xlu0 %v285, 64
    %v1126 = vpop.permute.xlu0 %1125
    %v1129 = vsel %vm354, %v1042, 0
    %1131 = vmatprep.subr.mxu0 0.0
    %1132 = vmatpush1.msra.mxu0 %v1126
    %1133 = vmatprep.subr.mxu0 0.0
    %1134 = vmatpush1.msra.mxu0 0.0
    %1135 = vmatprep.subr.mxu0 0.0
    %1136 = vmatpush1.msra.mxu0 0.0
    %1137 = vmatprep.subr.mxu0 0.0
    %1138 = vmatpush1.msra.mxu0 0.0
    %1139 = vmatprep.subr.mxu0 0.0
    %1140 = vmatpush1.msra.mxu0 0.0
    %1141 = vmatprep.subr.mxu0 0.0
    %1142 = vmatpush1.msra.mxu0 0.0
    %1143 = vmatprep.subr.mxu0 0.0
    %1144 = vmatpush1.msra.mxu0 0.0
    %1145 = vmatprep.subr.mxu0 0.0
    %1146 = vmatpush1.msra.mxu0 0.0
    %1147 = vmatprep.subr.mxu0 0.0
    %1148 = vmatpush1.msra.mxu0 0.0
    %1149 = vmatprep.subr.mxu0 0.0
    %1150 = vmatpush1.msra.mxu0 0.0
    %1151 = vmatprep.subr.mxu0 0.0
    %1152 = vmatpush1.msra.mxu0 0.0
    %1153 = vmatprep.subr.mxu0 0.0
    %1154 = vmatpush1.msra.mxu0 0.0
    %1155 = vmatprep.subr.mxu0 0.0
    %1156 = vmatpush1.msra.mxu0 0.0
    %1157 = vmatprep.subr.mxu0 0.0
    %1158 = vmatpush1.msra.mxu0 0.0
    %1159 = vmatprep.subr.mxu0 0.0
    %1160 = vmatpush1.msra.mxu0 0.0
    %1161 = vmatprep.subr.mxu0 0.0
    %1162 = vmatpush1.msra.mxu0 0.0
    %1163 = vmatprep.subr.mxu0 0.0
    %1164 = vmatpush1.msra.mxu0 0.0
    %1165 = vmatprep.subr.mxu0 0.0
    %1166 = vmatpush1.msra.mxu0 0.0
    %1167 = vmatprep.subr.mxu0 0.0
    %1168 = vmatpush1.msra.mxu0 0.0
    %1169 = vmatprep.subr.mxu0 0.0
    %1170 = vmatpush1.msra.mxu0 0.0
    %1171 = vmatprep.subr.mxu0 0.0
    %1172 = vmatpush1.msra.mxu0 0.0
    %1173 = vmatprep.subr.mxu0 0.0
    %1174 = vmatpush1.msra.mxu0 0.0
    %1175 = vmatprep.subr.mxu0 0.0
    %1176 = vmatpush1.msra.mxu0 0.0
    %1177 = vmatprep.subr.mxu0 0.0
    %1178 = vmatpush1.msra.mxu0 0.0
    %1179 = vmatprep.subr.mxu0 0.0
    %1180 = vmatpush1.msra.mxu0 0.0
    %1181 = vmatprep.subr.mxu0 0.0
    %1182 = vmatpush1.msra.mxu0 0.0
    %1183 = vmatprep.subr.mxu0 0.0
    %1184 = vmatpush1.msra.mxu0 0.0
    %1185 = vmatprep.subr.mxu0 0.0
    %1186 = vmatpush1.msra.mxu0 0.0
    %1187 = vmatprep.subr.mxu0 0.0
    %1188 = vmatpush1.msra.mxu0 0.0
    %1189 = vmatprep.subr.mxu0 0.0
    %1190 = vmatpush1.msra.mxu0 0.0
    %1191 = vmatprep.subr.mxu0 0.0
    %1192 = vmatpush1.msra.mxu0 0.0
    %1193 = vmatprep.subr.mxu0 0.0
    %1194 = vmatpush1.msra.mxu0 0.0
    %1195 = vmatprep.mubr.f32.mxu0 0.0
    %1196 = vmatmul.mubr.f32.gmra.mrb[0].mxu0 %v1129
    %v1197 = vpop.f32.mrb[0].mxu0
    %v1198 = vadd.f32 0.0, %v1197
    %v1199 = vpop.f32.mrb[0].mxu0
    %1200 = vdwg.mxu0
    %1201 = vrot.lane.b32.xlu0 %v289, 64
    %v1202 = vpop.permute.xlu0 %1201
    %v1205 = vsel %vm354, %v1043, 0
    %1207 = vmatprep.subr.mxu0 0.0
    %1208 = vmatpush1.msra.mxu0 %v1202
    %1209 = vmatprep.subr.mxu0 0.0
    %1210 = vmatpush1.msra.mxu0 0.0
    %1211 = vmatprep.subr.mxu0 0.0
    %1212 = vmatpush1.msra.mxu0 0.0
    %1213 = vmatprep.subr.mxu0 0.0
    %1214 = vmatpush1.msra.mxu0 0.0
    %1215 = vmatprep.subr.mxu0 0.0
    %1216 = vmatpush1.msra.mxu0 0.0
    %1217 = vmatprep.subr.mxu0 0.0
    %1218 = vmatpush1.msra.mxu0 0.0
    %1219 = vmatprep.subr.mxu0 0.0
    %1220 = vmatpush1.msra.mxu0 0.0
    %1221 = vmatprep.subr.mxu0 0.0
    %1222 = vmatpush1.msra.mxu0 0.0
    %1223 = vmatprep.subr.mxu0 0.0
    %1224 = vmatpush1.msra.mxu0 0.0
    %1225 = vmatprep.subr.mxu0 0.0
    %1226 = vmatpush1.msra.mxu0 0.0
    %1227 = vmatprep.subr.mxu0 0.0
    %1228 = vmatpush1.msra.mxu0 0.0
    %1229 = vmatprep.subr.mxu0 0.0
    %1230 = vmatpush1.msra.mxu0 0.0
    %1231 = vmatprep.subr.mxu0 0.0
    %1232 = vmatpush1.msra.mxu0 0.0
    %1233 = vmatprep.subr.mxu0 0.0
    %1234 = vmatpush1.msra.mxu0 0.0
    %1235 = vmatprep.subr.mxu0 0.0
    %1236 = vmatpush1.msra.mxu0 0.0
    %1237 = vmatprep.subr.mxu0 0.0
    %1238 = vmatpush1.msra.mxu0 0.0
    %1239 = vmatprep.subr.mxu0 0.0
    %1240 = vmatpush1.msra.mxu0 0.0
    %1241 = vmatprep.subr.mxu0 0.0
    %1242 = vmatpush1.msra.mxu0 0.0
    %1243 = vmatprep.subr.mxu0 0.0
    %1244 = vmatpush1.msra.mxu0 0.0
    %1245 = vmatprep.subr.mxu0 0.0
    %1246 = vmatpush1.msra.mxu0 0.0
    %1247 = vmatprep.subr.mxu0 0.0
    %1248 = vmatpush1.msra.mxu0 0.0
    %1249 = vmatprep.subr.mxu0 0.0
    %1250 = vmatpush1.msra.mxu0 0.0
    %1251 = vmatprep.subr.mxu0 0.0
    %1252 = vmatpush1.msra.mxu0 0.0
    %1253 = vmatprep.subr.mxu0 0.0
    %1254 = vmatpush1.msra.mxu0 0.0
    %1255 = vmatprep.subr.mxu0 0.0
    %1256 = vmatpush1.msra.mxu0 0.0
    %1257 = vmatprep.subr.mxu0 0.0
    %1258 = vmatpush1.msra.mxu0 0.0
    %1259 = vmatprep.subr.mxu0 0.0
    %1260 = vmatpush1.msra.mxu0 0.0
    %1261 = vmatprep.subr.mxu0 0.0
    %1262 = vmatpush1.msra.mxu0 0.0
    %1263 = vmatprep.subr.mxu0 0.0
    %1264 = vmatpush1.msra.mxu0 0.0
    %1265 = vmatprep.subr.mxu0 0.0
    %1266 = vmatpush1.msra.mxu0 0.0
    %1267 = vmatprep.subr.mxu0 0.0
    %1268 = vmatpush1.msra.mxu0 0.0
    %1269 = vmatprep.subr.mxu0 0.0
    %1270 = vmatpush1.msra.mxu0 0.0
    %1271 = vmatprep.mubr.f32.mxu0 0.0
    %1272 = vmatmul.mubr.f32.gmra.mrb[0].mxu0 %v1205
    %v1273 = vpop.f32.mrb[0].mxu0
    %v1274 = vadd.f32 0.0, %v1273
    %v1275 = vpop.f32.mrb[0].mxu0
    %1276 = vdwg.mxu0
    %1277 = vrot.lane.b32.xlu0 %v293, 64
    %v1278 = vpop.permute.xlu0 %1277
    %v1281 = vsel %vm354, %v1044, 0
    %1283 = vmatprep.subr.mxu0 0.0
    %1284 = vmatpush1.msra.mxu0 %v1278
    %1285 = vmatprep.subr.mxu0 0.0
    %1286 = vmatpush1.msra.mxu0 0.0
    %1287 = vmatprep.subr.mxu0 0.0
    %1288 = vmatpush1.msra.mxu0 0.0
    %1289 = vmatprep.subr.mxu0 0.0
    %1290 = vmatpush1.msra.mxu0 0.0
    %1291 = vmatprep.subr.mxu0 0.0
    %1292 = vmatpush1.msra.mxu0 0.0
    %1293 = vmatprep.subr.mxu0 0.0
    %1294 = vmatpush1.msra.mxu0 0.0
    %1295 = vmatprep.subr.mxu0 0.0
    %1296 = vmatpush1.msra.mxu0 0.0
    %1297 = vmatprep.subr.mxu0 0.0
    %1298 = vmatpush1.msra.mxu0 0.0
    %1299 = vmatprep.subr.mxu0 0.0
    %1300 = vmatpush1.msra.mxu0 0.0
    %1301 = vmatprep.subr.mxu0 0.0
    %1302 = vmatpush1.msra.mxu0 0.0
    %1303 = vmatprep.subr.mxu0 0.0
    %1304 = vmatpush1.msra.mxu0 0.0
    %1305 = vmatprep.subr.mxu0 0.0
    %1306 = vmatpush1.msra.mxu0 0.0
    %1307 = vmatprep.subr.mxu0 0.0
    %1308 = vmatpush1.msra.mxu0 0.0
    %1309 = vmatprep.subr.mxu0 0.0
    %1310 = vmatpush1.msra.mxu0 0.0
    %1311 = vmatprep.subr.mxu0 0.0
    %1312 = vmatpush1.msra.mxu0 0.0
    %1313 = vmatprep.subr.mxu0 0.0
    %1314 = vmatpush1.msra.mxu0 0.0
    %1315 = vmatprep.subr.mxu0 0.0
    %1316 = vmatpush1.msra.mxu0 0.0
    %1317 = vmatprep.subr.mxu0 0.0
    %1318 = vmatpush1.msra.mxu0 0.0
    %1319 = vmatprep.subr.mxu0 0.0
    %1320 = vmatpush1.msra.mxu0 0.0
    %1321 = vmatprep.subr.mxu0 0.0
    %1322 = vmatpush1.msra.mxu0 0.0
    %1323 = vmatprep.subr.mxu0 0.0
    %1324 = vmatpush1.msra.mxu0 0.0
    %1325 = vmatprep.subr.mxu0 0.0
    %1326 = vmatpush1.msra.mxu0 0.0
    %1327 = vmatprep.subr.mxu0 0.0
    %1328 = vmatpush1.msra.mxu0 0.0
    %1329 = vmatprep.subr.mxu0 0.0
    %1330 = vmatpush1.msra.mxu0 0.0
    %1331 = vmatprep.subr.mxu0 0.0
    %1332 = vmatpush1.msra.mxu0 0.0
    %1333 = vmatprep.subr.mxu0 0.0
    %1334 = vmatpush1.msra.mxu0 0.0
    %1335 = vmatprep.subr.mxu0 0.0
    %1336 = vmatpush1.msra.mxu0 0.0
    %1337 = vmatprep.subr.mxu0 0.0
    %1338 = vmatpush1.msra.mxu0 0.0
    %1339 = vmatprep.subr.mxu0 0.0
    %1340 = vmatpush1.msra.mxu0 0.0
    %1341 = vmatprep.subr.mxu0 0.0
    %1342 = vmatpush1.msra.mxu0 0.0
    %1343 = vmatprep.subr.mxu0 0.0
    %1344 = vmatpush1.msra.mxu0 0.0
    %1345 = vmatprep.subr.mxu0 0.0
    %1346 = vmatpush1.msra.mxu0 0.0
    %1347 = vmatprep.mubr.f32.mxu0 0.0
    %1348 = vmatmul.mubr.f32.gmra.mrb[0].mxu0 %v1281
    %v1349 = vpop.f32.mrb[0].mxu0
    %v1350 = vadd.f32 0.0, %v1349
    %v1351 = vpop.f32.mrb[0].mxu0
    %1352 = vdwg.mxu0
    %1353 = vrot.lane.b32.xlu0 %v201, 64
    %v1354 = vpop.permute.xlu0 %1353
    %v1357 = vsel %vm354, %v1045, 0
    %1359 = vmatprep.subr.mxu0 0.0
    %1360 = vmatpush1.msra.mxu0 %v1354
    %1361 = vmatprep.subr.mxu0 0.0
    %1362 = vmatpush1.msra.mxu0 0.0
    %1363 = vmatprep.subr.mxu0 0.0
    %1364 = vmatpush1.msra.mxu0 0.0
    %1365 = vmatprep.subr.mxu0 0.0
    %1366 = vmatpush1.msra.mxu0 0.0
    %1367 = vmatprep.subr.mxu0 0.0
    %1368 = vmatpush1.msra.mxu0 0.0
    %1369 = vmatprep.subr.mxu0 0.0
    %1370 = vmatpush1.msra.mxu0 0.0
    %1371 = vmatprep.subr.mxu0 0.0
    %1372 = vmatpush1.msra.mxu0 0.0
    %1373 = vmatprep.subr.mxu0 0.0
    %1374 = vmatpush1.msra.mxu0 0.0
    %1375 = vmatprep.subr.mxu0 0.0
    %1376 = vmatpush1.msra.mxu0 0.0
    %1377 = vmatprep.subr.mxu0 0.0
    %1378 = vmatpush1.msra.mxu0 0.0
    %1379 = vmatprep.subr.mxu0 0.0
    %1380 = vmatpush1.msra.mxu0 0.0
    %1381 = vmatprep.subr.mxu0 0.0
    %1382 = vmatpush1.msra.mxu0 0.0
    %1383 = vmatprep.subr.mxu0 0.0
    %1384 = vmatpush1.msra.mxu0 0.0
    %1385 = vmatprep.subr.mxu0 0.0
    %1386 = vmatpush1.msra.mxu0 0.0
    %1387 = vmatprep.subr.mxu0 0.0
    %1388 = vmatpush1.msra.mxu0 0.0
    %1389 = vmatprep.subr.mxu0 0.0
    %1390 = vmatpush1.msra.mxu0 0.0
    %1391 = vmatprep.subr.mxu0 0.0
    %1392 = vmatpush1.msra.mxu0 0.0
    %1393 = vmatprep.subr.mxu0 0.0
    %1394 = vmatpush1.msra.mxu0 0.0
    %1395 = vmatprep.subr.mxu0 0.0
    %1396 = vmatpush1.msra.mxu0 0.0
    %1397 = vmatprep.subr.mxu0 0.0
    %1398 = vmatpush1.msra.mxu0 0.0
    %1399 = vmatprep.subr.mxu0 0.0
    %1400 = vmatpush1.msra.mxu0 0.0
    %1401 = vmatprep.subr.mxu0 0.0
    %1402 = vmatpush1.msra.mxu0 0.0
    %1403 = vmatprep.subr.mxu0 0.0
    %1404 = vmatpush1.msra.mxu0 0.0
    %1405 = vmatprep.subr.mxu0 0.0
    %1406 = vmatpush1.msra.mxu0 0.0
    %1407 = vmatprep.subr.mxu0 0.0
    %1408 = vmatpush1.msra.mxu0 0.0
    %1409 = vmatprep.subr.mxu0 0.0
    %1410 = vmatpush1.msra.mxu0 0.0
    %1411 = vmatprep.subr.mxu0 0.0
    %1412 = vmatpush1.msra.mxu0 0.0
    %1413 = vmatprep.subr.mxu0 0.0
    %1414 = vmatpush1.msra.mxu0 0.0
    %1415 = vmatprep.subr.mxu0 0.0
    %1416 = vmatpush1.msra.mxu0 0.0
    %1417 = vmatprep.subr.mxu0 0.0
    %1418 = vmatpush1.msra.mxu0 0.0
    %1419 = vmatprep.subr.mxu0 0.0
    %1420 = vmatpush1.msra.mxu0 0.0
    %1421 = vmatprep.subr.mxu0 0.0
    %1422 = vmatpush1.msra.mxu0 0.0
    %1423 = vmatprep.mubr.f32.mxu0 0.0
    %1424 = vmatmul.mubr.f32.gmra.mrb[0].mxu0 %v1357
    %v1425 = vpop.f32.mrb[0].mxu0
    %v1426 = vadd.f32 0.0, %v1425
    %v1427 = vpop.f32.mrb[0].mxu0
    %1428 = vdwg.mxu0
    %1429 = vrot.lane.b32.xlu0 %v287, 64
    %v1430 = vpop.permute.xlu0 %1429
    %v1433 = vsel %vm354, %v1046, 0
    %1435 = vmatprep.subr.mxu0 0.0
    %1436 = vmatpush1.msra.mxu0 %v1430
    %1437 = vmatprep.subr.mxu0 0.0
    %1438 = vmatpush1.msra.mxu0 0.0
    %1439 = vmatprep.subr.mxu0 0.0
    %1440 = vmatpush1.msra.mxu0 0.0
    %1441 = vmatprep.subr.mxu0 0.0
    %1442 = vmatpush1.msra.mxu0 0.0
    %1443 = vmatprep.subr.mxu0 0.0
    %1444 = vmatpush1.msra.mxu0 0.0
    %1445 = vmatprep.subr.mxu0 0.0
    %1446 = vmatpush1.msra.mxu0 0.0
    %1447 = vmatprep.subr.mxu0 0.0
    %1448 = vmatpush1.msra.mxu0 0.0
    %1449 = vmatprep.subr.mxu0 0.0
    %1450 = vmatpush1.msra.mxu0 0.0
    %1451 = vmatprep.subr.mxu0 0.0
    %1452 = vmatpush1.msra.mxu0 0.0
    %1453 = vmatprep.subr.mxu0 0.0
    %1454 = vmatpush1.msra.mxu0 0.0
    %1455 = vmatprep.subr.mxu0 0.0
    %1456 = vmatpush1.msra.mxu0 0.0
    %1457 = vmatprep.subr.mxu0 0.0
    %1458 = vmatpush1.msra.mxu0 0.0
    %1459 = vmatprep.subr.mxu0 0.0
    %1460 = vmatpush1.msra.mxu0 0.0
    %1461 = vmatprep.subr.mxu0 0.0
    %1462 = vmatpush1.msra.mxu0 0.0
    %1463 = vmatprep.subr.mxu0 0.0
    %1464 = vmatpush1.msra.mxu0 0.0
    %1465 = vmatprep.subr.mxu0 0.0
    %1466 = vmatpush1.msra.mxu0 0.0
    %1467 = vmatprep.subr.mxu0 0.0
    %1468 = vmatpush1.msra.mxu0 0.0
    %1469 = vmatprep.subr.mxu0 0.0
    %1470 = vmatpush1.msra.mxu0 0.0
    %1471 = vmatprep.subr.mxu0 0.0
    %1472 = vmatpush1.msra.mxu0 0.0
    %1473 = vmatprep.subr.mxu0 0.0
    %1474 = vmatpush1.msra.mxu0 0.0
    %1475 = vmatprep.subr.mxu0 0.0
    %1476 = vmatpush1.msra.mxu0 0.0
    %1477 = vmatprep.subr.mxu0 0.0
    %1478 = vmatpush1.msra.mxu0 0.0
    %1479 = vmatprep.subr.mxu0 0.0
    %1480 = vmatpush1.msra.mxu0 0.0
    %1481 = vmatprep.subr.mxu0 0.0
    %1482 = vmatpush1.msra.mxu0 0.0
    %1483 = vmatprep.subr.mxu0 0.0
    %1484 = vmatpush1.msra.mxu0 0.0
    %1485 = vmatprep.subr.mxu0 0.0
    %1486 = vmatpush1.msra.mxu0 0.0
    %1487 = vmatprep.subr.mxu0 0.0
    %1488 = vmatpush1.msra.mxu0 0.0
    %1489 = vmatprep.subr.mxu0 0.0
    %1490 = vmatpush1.msra.mxu0 0.0
    %1491 = vmatprep.subr.mxu0 0.0
    %1492 = vmatpush1.msra.mxu0 0.0
    %1493 = vmatprep.subr.mxu0 0.0
    %1494 = vmatpush1.msra.mxu0 0.0
    %1495 = vmatprep.subr.mxu0 0.0
    %1496 = vmatpush1.msra.mxu0 0.0
    %1497 = vmatprep.subr.mxu0 0.0
    %1498 = vmatpush1.msra.mxu0 0.0
    %1499 = vmatprep.mubr.f32.mxu0 0.0
    %1500 = vmatmul.mubr.f32.gmra.mrb[0].mxu0 %v1433
    %v1501 = vpop.f32.mrb[0].mxu0
    %v1502 = vadd.f32 0.0, %v1501
    %v1503 = vpop.f32.mrb[0].mxu0
    %1504 = vdwg.mxu0
    %1505 = vrot.lane.b32.xlu0 %v291, 64
    %v1506 = vpop.permute.xlu0 %1505
    %v1509 = vsel %vm354, %v1047, 0
    %1511 = vmatprep.subr.mxu0 0.0
    %1512 = vmatpush1.msra.mxu0 %v1506
    %1513 = vmatprep.subr.mxu0 0.0
    %1514 = vmatpush1.msra.mxu0 0.0
    %1515 = vmatprep.subr.mxu0 0.0
    %1516 = vmatpush1.msra.mxu0 0.0
    %1517 = vmatprep.subr.mxu0 0.0
    %1518 = vmatpush1.msra.mxu0 0.0
    %1519 = vmatprep.subr.mxu0 0.0
    %1520 = vmatpush1.msra.mxu0 0.0
    %1521 = vmatprep.subr.mxu0 0.0
    %1522 = vmatpush1.msra.mxu0 0.0
    %1523 = vmatprep.subr.mxu0 0.0
    %1524 = vmatpush1.msra.mxu0 0.0
    %1525 = vmatprep.subr.mxu0 0.0
    %1526 = vmatpush1.msra.mxu0 0.0
    %1527 = vmatprep.subr.mxu0 0.0
    %1528 = vmatpush1.msra.mxu0 0.0
    %1529 = vmatprep.subr.mxu0 0.0
    %1530 = vmatpush1.msra.mxu0 0.0
    %1531 = vmatprep.subr.mxu0 0.0
    %1532 = vmatpush1.msra.mxu0 0.0
    %1533 = vmatprep.subr.mxu0 0.0
    %1534 = vmatpush1.msra.mxu0 0.0
    %1535 = vmatprep.subr.mxu0 0.0
    %1536 = vmatpush1.msra.mxu0 0.0
    %1537 = vmatprep.subr.mxu0 0.0
    %1538 = vmatpush1.msra.mxu0 0.0
    %1539 = vmatprep.subr.mxu0 0.0
    %1540 = vmatpush1.msra.mxu0 0.0
    %1541 = vmatprep.subr.mxu0 0.0
    %1542 = vmatpush1.msra.mxu0 0.0
    %1543 = vmatprep.subr.mxu0 0.0
    %1544 = vmatpush1.msra.mxu0 0.0
    %1545 = vmatprep.subr.mxu0 0.0
    %1546 = vmatpush1.msra.mxu0 0.0
    %1547 = vmatprep.subr.mxu0 0.0
    %1548 = vmatpush1.msra.mxu0 0.0
    %1549 = vmatprep.subr.mxu0 0.0
    %1550 = vmatpush1.msra.mxu0 0.0
    %1551 = vmatprep.subr.mxu0 0.0
    %1552 = vmatpush1.msra.mxu0 0.0
    %1553 = vmatprep.subr.mxu0 0.0
    %1554 = vmatpush1.msra.mxu0 0.0
    %1555 = vmatprep.subr.mxu0 0.0
    %1556 = vmatpush1.msra.mxu0 0.0
    %1557 = vmatprep.subr.mxu0 0.0
    %1558 = vmatpush1.msra.mxu0 0.0
    %1559 = vmatprep.subr.mxu0 0.0
    %1560 = vmatpush1.msra.mxu0 0.0
    %1561 = vmatprep.subr.mxu0 0.0
    %1562 = vmatpush1.msra.mxu0 0.0
    %1563 = vmatprep.subr.mxu0 0.0
    %1564 = vmatpush1.msra.mxu0 0.0
    %1565 = vmatprep.subr.mxu0 0.0
    %1566 = vmatpush1.msra.mxu0 0.0
    %1567 = vmatprep.subr.mxu0 0.0
    %1568 = vmatpush1.msra.mxu0 0.0
    %1569 = vmatprep.subr.mxu0 0.0
    %1570 = vmatpush1.msra.mxu0 0.0
    %1571 = vmatprep.subr.mxu0 0.0
    %1572 = vmatpush1.msra.mxu0 0.0
    %1573 = vmatprep.subr.mxu0 0.0
    %1574 = vmatpush1.msra.mxu0 0.0
    %1575 = vmatprep.mubr.f32.mxu0 0.0
    %1576 = vmatmul.mubr.f32.gmra.mrb[0].mxu0 %v1509
    %v1577 = vpop.f32.mrb[0].mxu0
    %v1578 = vadd.f32 0.0, %v1577
    %v1579 = vpop.f32.mrb[0].mxu0
    %1580 = vdwg.mxu0
    %1581 = vrot.lane.b32.xlu0 %v295, 64
    %v1582 = vpop.permute.xlu0 %1581
    %v1585 = vsel %vm354, %v1048, 0
    %1587 = vmatprep.subr.mxu0 0.0
    %1588 = vmatpush1.msra.mxu0 %v1582
    %1589 = vmatprep.subr.mxu0 0.0
    %1590 = vmatpush1.msra.mxu0 0.0
    %1591 = vmatprep.subr.mxu0 0.0
    %1592 = vmatpush1.msra.mxu0 0.0
    %1593 = vmatprep.subr.mxu0 0.0
    %1594 = vmatpush1.msra.mxu0 0.0
    %1595 = vmatprep.subr.mxu0 0.0
    %1596 = vmatpush1.msra.mxu0 0.0
    %1597 = vmatprep.subr.mxu0 0.0
    %1598 = vmatpush1.msra.mxu0 0.0
    %1599 = vmatprep.subr.mxu0 0.0
    %1600 = vmatpush1.msra.mxu0 0.0
    %1601 = vmatprep.subr.mxu0 0.0
    %1602 = vmatpush1.msra.mxu0 0.0
    %1603 = vmatprep.subr.mxu0 0.0
    %1604 = vmatpush1.msra.mxu0 0.0
    %1605 = vmatprep.subr.mxu0 0.0
    %1606 = vmatpush1.msra.mxu0 0.0
    %1607 = vmatprep.subr.mxu0 0.0
    %1608 = vmatpush1.msra.mxu0 0.0
    %1609 = vmatprep.subr.mxu0 0.0
    %1610 = vmatpush1.msra.mxu0 0.0
    %1611 = vmatprep.subr.mxu0 0.0
    %1612 = vmatpush1.msra.mxu0 0.0
    %1613 = vmatprep.subr.mxu0 0.0
    %1614 = vmatpush1.msra.mxu0 0.0
    %1615 = vmatprep.subr.mxu0 0.0
    %1616 = vmatpush1.msra.mxu0 0.0
    %1617 = vmatprep.subr.mxu0 0.0
    %1618 = vmatpush1.msra.mxu0 0.0
    %1619 = vmatprep.subr.mxu0 0.0
    %1620 = vmatpush1.msra.mxu0 0.0
    %1621 = vmatprep.subr.mxu0 0.0
    %1622 = vmatpush1.msra.mxu0 0.0
    %1623 = vmatprep.subr.mxu0 0.0
    %1624 = vmatpush1.msra.mxu0 0.0
    %1625 = vmatprep.subr.mxu0 0.0
    %1626 = vmatpush1.msra.mxu0 0.0
    %1627 = vmatprep.subr.mxu0 0.0
    %1628 = vmatpush1.msra.mxu0 0.0
    %1629 = vmatprep.subr.mxu0 0.0
    %1630 = vmatpush1.msra.mxu0 0.0
    %1631 = vmatprep.subr.mxu0 0.0
    %1632 = vmatpush1.msra.mxu0 0.0
    %1633 = vmatprep.subr.mxu0 0.0
    %1634 = vmatpush1.msra.mxu0 0.0
    %1635 = vmatprep.subr.mxu0 0.0
    %1636 = vmatpush1.msra.mxu0 0.0
    %1637 = vmatprep.subr.mxu0 0.0
    %1638 = vmatpush1.msra.mxu0 0.0
    %1639 = vmatprep.subr.mxu0 0.0
    %1640 = vmatpush1.msra.mxu0 0.0
    %1641 = vmatprep.subr.mxu0 0.0
    %1642 = vmatpush1.msra.mxu0 0.0
    %1643 = vmatprep.subr.mxu0 0.0
    %1644 = vmatpush1.msra.mxu0 0.0
    %1645 = vmatprep.subr.mxu0 0.0
    %1646 = vmatpush1.msra.mxu0 0.0
    %1647 = vmatprep.subr.mxu0 0.0
    %1648 = vmatpush1.msra.mxu0 0.0
    %1649 = vmatprep.subr.mxu0 0.0
    %1650 = vmatpush1.msra.mxu0 0.0
    %1651 = vmatprep.mubr.f32.mxu0 0.0
    %1652 = vmatmul.mubr.f32.gmra.mrb[0].mxu0 %v1585
    %v1653 = vpop.f32.mrb[0].mxu0
    %v1654 = vadd.f32 0.0, %v1653
    %v1655 = vpop.f32.mrb[0].mxu0
    %1656 = vdwg.mxu0
    %1659 = vrot.lane.b32.xlu0 %v1198, 8
    %v1660 = vpop.permute.xlu0 %1659
    %1661 = vrot.lane.b32.xlu0 %v1502, 8
    %v1662 = vpop.permute.xlu0 %1661
    %1667 = vrot.lane.b32.xlu0 %v1274, 16
    %v1668 = vpop.permute.xlu0 %1667
    %1669 = vrot.lane.b32.xlu0 %v1578, 16
    %v1670 = vpop.permute.xlu0 %1669
    %1675 = vrot.lane.b32.xlu0 %v1350, 24
    %v1676 = vpop.permute.xlu0 %1675
    %1677 = vrot.lane.b32.xlu0 %v1654, 24
    %v1678 = vpop.permute.xlu0 %1677
    %v1681 = vsel %vm354, %v1122, %v1660
    %v1682 = vsel %vm354, %v1426, %v1662
    %vm1683 = vcmask 130048
    %v1684 = vsel %vm1683, %v1681, %v1668
    %v1685 = vsel %vm1683, %v1682, %v1670
    %vm1686 = vcmask 195584
    %v1687 = vsel %vm1686, %v1684, %v1676
    %v1688 = vsel %vm1686, %v1685, %v1678
    %v1689 = vld [vmem:[#allocation5] sm:$0xff]
    %v1690 = vld [vmem:[#allocation5 + $0x8] sm:$0xff]
    %v1691 = vld [vmem:[#allocation5 + $0x10] sm:$0xff]
    %v1692 = vld [vmem:[#allocation5 + $0x18] sm:$0xff]
    %v1694 = vsel %vm74, %v1687, 0
    %v1697 = vsel %vm74, %v1688, 0
    %1699 = vmatprep.subr.mxu0 0.0
    %1700 = vmatpush1.msra.mxu0 %v1689
    %1701 = vmatprep.subr.mxu0 0.0
    %1702 = vmatpush1.msra.mxu0 %v1690
    %1703 = vmatprep.subr.mxu0 0.0
    %1704 = vmatpush1.msra.mxu0 %v1691
    %1705 = vmatprep.subr.mxu0 0.0
    %1706 = vmatpush1.msra.mxu0 %v1692
    %1707 = vmatprep.subr.mxu0 0.0
    %1708 = vmatpush1.msra.mxu0 0.0
    %1709 = vmatprep.subr.mxu0 0.0
    %1710 = vmatpush1.msra.mxu0 0.0
    %1711 = vmatprep.subr.mxu0 0.0
    %1712 = vmatpush1.msra.mxu0 0.0
    %1713 = vmatprep.subr.mxu0 0.0
    %1714 = vmatpush1.msra.mxu0 0.0
    %1715 = vmatprep.subr.mxu0 0.0
    %1716 = vmatpush1.msra.mxu0 0.0
    %1717 = vmatprep.subr.mxu0 0.0
    %1718 = vmatpush1.msra.mxu0 0.0
    %1719 = vmatprep.subr.mxu0 0.0
    %1720 = vmatpush1.msra.mxu0 0.0
    %1721 = vmatprep.subr.mxu0 0.0
    %1722 = vmatpush1.msra.mxu0 0.0
    %1723 = vmatprep.subr.mxu0 0.0
    %1724 = vmatpush1.msra.mxu0 0.0
    %1725 = vmatprep.subr.mxu0 0.0
    %1726 = vmatpush1.msra.mxu0 0.0
    %1727 = vmatprep.subr.mxu0 0.0
    %1728 = vmatpush1.msra.mxu0 0.0
    %1729 = vmatprep.subr.mxu0 0.0
    %1730 = vmatpush1.msra.mxu0 0.0
    %1731 = vmatprep.subr.mxu0 0.0
    %1732 = vmatpush1.msra.mxu0 0.0
    %1733 = vmatprep.subr.mxu0 0.0
    %1734 = vmatpush1.msra.mxu0 0.0
    %1735 = vmatprep.subr.mxu0 0.0
    %1736 = vmatpush1.msra.mxu0 0.0
    %1737 = vmatprep.subr.mxu0 0.0
    %1738 = vmatpush1.msra.mxu0 0.0
    %1739 = vmatprep.subr.mxu0 0.0
    %1740 = vmatpush1.msra.mxu0 0.0
    %1741 = vmatprep.subr.mxu0 0.0
    %1742 = vmatpush1.msra.mxu0 0.0
    %1743 = vmatprep.subr.mxu0 0.0
    %1744 = vmatpush1.msra.mxu0 0.0
    %1745 = vmatprep.subr.mxu0 0.0
    %1746 = vmatpush1.msra.mxu0 0.0
    %1747 = vmatprep.subr.mxu0 0.0
    %1748 = vmatpush1.msra.mxu0 0.0
    %1749 = vmatprep.subr.mxu0 0.0
    %1750 = vmatpush1.msra.mxu0 0.0
    %1751 = vmatprep.subr.mxu0 0.0
    %1752 = vmatpush1.msra.mxu0 0.0
    %1753 = vmatprep.subr.mxu0 0.0
    %1754 = vmatpush1.msra.mxu0 0.0
    %1755 = vmatprep.subr.mxu0 0.0
    %1756 = vmatpush1.msra.mxu0 0.0
    %1757 = vmatprep.subr.mxu0 0.0
    %1758 = vmatpush1.msra.mxu0 0.0
    %1759 = vmatprep.subr.mxu0 0.0
    %1760 = vmatpush1.msra.mxu0 0.0
    %1761 = vmatprep.subr.mxu0 0.0
    %1762 = vmatpush1.msra.mxu0 0.0
    %1763 = vmatprep.mubr.f32.mxu0 0.0
    %1764 = vmatmul.mubr.f32.gmra.mrb[0].mxu0 %v1694
    %v1765 = vpop.f32.mrb[0].mxu0
    %v1766 = vadd.f32 0.0, %v1765
    %v1767 = vpop.f32.mrb[0].mxu0
    %1768 = vmatprep.mubr.f32.mxu0 0.0
    %1769 = vmatmul.mubr.f32.gmra.mrb[0].mxu0 %v1697
    %v1770 = vpop.f32.mrb[0].mxu0
    %v1771 = vadd.f32 0.0, %v1770
    %v1772 = vpop.f32.mrb[0].mxu0
    %1773 = vdwg.mxu0
    %v1774 = vadd.f32 %v71, %v1766
    %v1775 = vadd.f32 %v72, %v1771
    %v1776 = vsel %vm74, %v1774, 0.0
    %1777 = vadd.xlane.f32.xlu0 %v1776
    %v1778 = vpop.xlane.xlu0 %1777
    %v1779 = vsel %vm74, %v1775, 0.0
    %1780 = vadd.xlane.f32.xlu0 %v1779
    %v1781 = vpop.xlane.xlu0 %1780
    %v1782 = vmul.f32 %v1778, %v81
    %v1783 = vmul.f32 %v1781, %v81
    %v1784 = vsub.f32 %v1774, %v1782
    %v1785 = vsub.f32 %v1775, %v1783
    %v1786 = vmul.f32 %v1784, %v1784
    %v1787 = vmul.f32 %v1785, %v1785
    %v1788 = vsel %vm74, %v1786, 0.0
    %1789 = vadd.xlane.f32.xlu0 %v1788
    %v1790 = vpop.xlane.xlu0 %1789
    %v1791 = vsel %vm74, %v1787, 0.0
    %1792 = vadd.xlane.f32.xlu0 %v1791
    %v1793 = vpop.xlane.xlu0 %1792
    %v1794 = vmul.f32 %v1790, %v81
    %v1795 = vmul.f32 %v1793, %v81
    %v1796 = vadd.f32 %v1794, 1e-05
    %v1797 = vadd.f32 %v1795, 1e-05
    %v1798 = vrsqrt.pop %v1796
    %v1799 = vrsqrt.pop %v1797
    %v1800 = vmul.f32 %v1784, %v1798
    %v1801 = vmul.f32 %v1785, %v1799
    %v1802 = vlaneseq
    %v1803 = vshrl.u32 %v1802, 7
    %v1804 = vsub.s32 2, %v1803
    %v1805 = vrot.slane %v73, %v1804
    %v1806 = vmul.f32 %v1800, %v1805
    %v1807 = vmul.f32 %v1801, %v1805
    %v1808 = vlaneseq
    %v1809 = vshrl.u32 %v1808, 7
    %v1810 = vsub.s32 3, %v1809
    %v1811 = vrot.slane %v73, %v1810
    %v1812 = vadd.f32 %v1806, %v1811
    %v1813 = vadd.f32 %v1807, %v1811
    %v1814 = vld [vmem:[#allocation7] sm:$0xff]
    %v1815 = vld [vmem:[#allocation7 + $0x8] sm:$0xff]
    %v1816 = vld [vmem:[#allocation7 + $0x10] sm:$0xff]
    %v1817 = vld [vmem:[#allocation7 + $0x18] sm:$0xff]
    %v1819 = vsel %vm74, %v1812, 0
    %v1822 = vsel %vm74, %v1813, 0
    %1824 = vmatprep.subr.mxu0 0.0
    %1825 = vmatpush1.msra.mxu0 %v1814
    %1826 = vmatprep.subr.mxu0 0.0
    %1827 = vmatpush1.msra.mxu0 %v1815
    %1828 = vmatprep.subr.mxu0 0.0
    %1829 = vmatpush1.msra.mxu0 %v1816
    %1830 = vmatprep.subr.mxu0 0.0
    %1831 = vmatpush1.msra.mxu0 %v1817
    %1832 = vmatprep.subr.mxu0 0.0
    %1833 = vmatpush1.msra.mxu0 0.0
    %1834 = vmatprep.subr.mxu0 0.0
    %1835 = vmatpush1.msra.mxu0 0.0
    %1836 = vmatprep.subr.mxu0 0.0
    %1837 = vmatpush1.msra.mxu0 0.0
    %1838 = vmatprep.subr.mxu0 0.0
    %1839 = vmatpush1.msra.mxu0 0.0
    %1840 = vmatprep.subr.mxu0 0.0
    %1841 = vmatpush1.msra.mxu0 0.0
    %1842 = vmatprep.subr.mxu0 0.0
    %1843 = vmatpush1.msra.mxu0 0.0
    %1844 = vmatprep.subr.mxu0 0.0
    %1845 = vmatpush1.msra.mxu0 0.0
    %1846 = vmatprep.subr.mxu0 0.0
    %1847 = vmatpush1.msra.mxu0 0.0
    %1848 = vmatprep.subr.mxu0 0.0
    %1849 = vmatpush1.msra.mxu0 0.0
    %1850 = vmatprep.subr.mxu0 0.0
    %1851 = vmatpush1.msra.mxu0 0.0
    %1852 = vmatprep.subr.mxu0 0.0
    %1853 = vmatpush1.msra.mxu0 0.0
    %1854 = vmatprep.subr.mxu0 0.0
    %1855 = vmatpush1.msra.mxu0 0.0
    %1856 = vmatprep.subr.mxu0 0.0
    %1857 = vmatpush1.msra.mxu0 0.0
    %1858 = vmatprep.subr.mxu0 0.0
    %1859 = vmatpush1.msra.mxu0 0.0
    %1860 = vmatprep.subr.mxu0 0.0
    %1861 = vmatpush1.msra.mxu0 0.0
    %1862 = vmatprep.subr.mxu0 0.0
    %1863 = vmatpush1.msra.mxu0 0.0
    %1864 = vmatprep.subr.mxu0 0.0
    %1865 = vmatpush1.msra.mxu0 0.0
    %1866 = vmatprep.subr.mxu0 0.0
    %1867 = vmatpush1.msra.mxu0 0.0
    %1868 = vmatprep.subr.mxu0 0.0
    %1869 = vmatpush1.msra.mxu0 0.0
    %1870 = vmatprep.subr.mxu0 0.0
    %1871 = vmatpush1.msra.mxu0 0.0
    %1872 = vmatprep.subr.mxu0 0.0
    %1873 = vmatpush1.msra.mxu0 0.0
    %1874 = vmatprep.subr.mxu0 0.0
    %1875 = vmatpush1.msra.mxu0 0.0
    %1876 = vmatprep.subr.mxu0 0.0
    %1877 = vmatpush1.msra.mxu0 0.0
    %1878 = vmatprep.subr.mxu0 0.0
    %1879 = vmatpush1.msra.mxu0 0.0
    %1880 = vmatprep.subr.mxu0 0.0
    %1881 = vmatpush1.msra.mxu0 0.0
    %1882 = vmatprep.subr.mxu0 0.0
    %1883 = vmatpush1.msra.mxu0 0.0
    %1884 = vmatprep.subr.mxu0 0.0
    %1885 = vmatpush1.msra.mxu0 0.0
    %1886 = vmatprep.subr.mxu0 0.0
    %1887 = vmatpush1.msra.mxu0 0.0
    %1888 = vmatprep.mubr.f32.mxu0 0.0
    %1889 = vmatmul.mubr.f32.gmra.mrb[0].mxu0 %v1819
    %v1890 = vpop.f32.mrb[0].mxu0
    %v1891 = vadd.f32 0.0, %v1890
    %v1892 = vpop.f32.mrb[0].mxu0
    %1893 = vmatprep.mubr.f32.mxu0 0.0
    %1894 = vmatmul.mubr.f32.gmra.mrb[0].mxu0 %v1822
    %v1895 = vpop.f32.mrb[0].mxu0
    %v1896 = vadd.f32 0.0, %v1895
    %v1897 = vpop.f32.mrb[0].mxu0
    %1898 = vdwg.mxu0
    %v1899 = vmul.f32 %v1891, 0.5
    %v1900 = vmul.f32 %v1896, 0.5
    %v1901 = vmul.f32 %v1891, 0.70710677
    %v1902 = vmul.f32 %v1896, 0.70710677
    %v1903 = verf.f32.pop %v1901
    %v1904 = verf.f32.pop %v1902
    %v1905 = vadd.f32 %v1903, 1.0
    %v1906 = vadd.f32 %v1904, 1.0
    %v1907 = vmul.f32 %v1899, %v1905
    %v1908 = vmul.f32 %v1900, %v1906
    %v1909 = vld [vmem:[%s6] sm:$0xff]
    %v1910 = vld [vmem:[%s6 + $0x8] sm:$0xff]
    %v1911 = vld [vmem:[%s6 + $0x10] sm:$0xff]
    %v1912 = vld [vmem:[%s6 + $0x18] sm:$0xff]
    %v1913 = vld [vmem:[%s6 + $0x20] sm:$0xff]
    %v1914 = vld [vmem:[%s6 + $0x28] sm:$0xff]
    %v1915 = vld [vmem:[%s6 + $0x30] sm:$0xff]
    %v1916 = vld [vmem:[%s6 + $0x38] sm:$0xff]
    %vm1917 = vcmask 523264
    %v1919 = vsel %vm1917, %v1907, 0
    %v1922 = vsel %vm1917, %v1908, 0
    %1924 = vmatprep.subr.mxu0 0.0
    %1925 = vmatpush1.msra.mxu0 %v1909
    %1926 = vmatprep.subr.mxu0 0.0
    %1927 = vmatpush1.msra.mxu0 %v1910
    %1928 = vmatprep.subr.mxu0 0.0
    %1929 = vmatpush1.msra.mxu0 %v1911
    %1930 = vmatprep.subr.mxu0 0.0
    %1931 = vmatpush1.msra.mxu0 %v1912
    %1932 = vmatprep.subr.mxu0 0.0
    %1933 = vmatpush1.msra.mxu0 %v1913
    %1934 = vmatprep.subr.mxu0 0.0
    %1935 = vmatpush1.msra.mxu0 %v1914
    %1936 = vmatprep.subr.mxu0 0.0
    %1937 = vmatpush1.msra.mxu0 %v1915
    %1938 = vmatprep.subr.mxu0 0.0
    %1939 = vmatpush1.msra.mxu0 %v1916
    %1940 = vmatprep.subr.mxu0 0.0
    %1941 = vmatpush1.msra.mxu0 0.0
    %1942 = vmatprep.subr.mxu0 0.0
    %1943 = vmatpush1.msra.mxu0 0.0
    %1944 = vmatprep.subr.mxu0 0.0
    %1945 = vmatpush1.msra.mxu0 0.0
    %1946 = vmatprep.subr.mxu0 0.0
    %1947 = vmatpush1.msra.mxu0 0.0
    %1948 = vmatprep.subr.mxu0 0.0
    %1949 = vmatpush1.msra.mxu0 0.0
    %1950 = vmatprep.subr.mxu0 0.0
    %1951 = vmatpush1.msra.mxu0 0.0
    %1952 = vmatprep.subr.mxu0 0.0
    %1953 = vmatpush1.msra.mxu0 0.0
    %1954 = vmatprep.subr.mxu0 0.0
    %1955 = vmatpush1.msra.mxu0 0.0
    %1956 = vmatprep.subr.mxu0 0.0
    %1957 = vmatpush1.msra.mxu0 0.0
    %1958 = vmatprep.subr.mxu0 0.0
    %1959 = vmatpush1.msra.mxu0 0.0
    %1960 = vmatprep.subr.mxu0 0.0
    %1961 = vmatpush1.msra.mxu0 0.0
    %1962 = vmatprep.subr.mxu0 0.0
    %1963 = vmatpush1.msra.mxu0 0.0
    %1964 = vmatprep.subr.mxu0 0.0
    %1965 = vmatpush1.msra.mxu0 0.0
    %1966 = vmatprep.subr.mxu0 0.0
    %1967 = vmatpush1.msra.mxu0 0.0
    %1968 = vmatprep.subr.mxu0 0.0
    %1969 = vmatpush1.msra.mxu0 0.0
    %1970 = vmatprep.subr.mxu0 0.0
    %1971 = vmatpush1.msra.mxu0 0.0
    %1972 = vmatprep.subr.mxu0 0.0
    %1973 = vmatpush1.msra.mxu0 0.0
    %1974 = vmatprep.subr.mxu0 0.0
    %1975 = vmatpush1.msra.mxu0 0.0
    %1976 = vmatprep.subr.mxu0 0.0
    %1977 = vmatpush1.msra.mxu0 0.0
    %1978 = vmatprep.subr.mxu0 0.0
    %1979 = vmatpush1.msra.mxu0 0.0
    %1980 = vmatprep.subr.mxu0 0.0
    %1981 = vmatpush1.msra.mxu0 0.0
    %1982 = vmatprep.subr.mxu0 0.0
    %1983 = vmatpush1.msra.mxu0 0.0
    %1984 = vmatprep.subr.mxu0 0.0
    %1985 = vmatpush1.msra.mxu0 0.0
    %1986 = vmatprep.subr.mxu0 0.0
    %1987 = vmatpush1.msra.mxu0 0.0
    %1988 = vmatprep.mubr.f32.mxu0 0.0
    %1989 = vmatmul.mubr.f32.gmra.mrb[0].mxu0 %v1919
    %v1990 = vpop.f32.mrb[0].mxu0
    %v1991 = vadd.f32 0.0, %v1990
    %v1992 = vpop.f32.mrb[0].mxu0
    %1993 = vmatprep.mubr.f32.mxu0 0.0
    %1994 = vmatmul.mubr.f32.gmra.mrb[0].mxu0 %v1922
    %v1995 = vpop.f32.mrb[0].mxu0
    %v1996 = vadd.f32 0.0, %v1995
    %v1997 = vpop.f32.mrb[0].mxu0
    %1998 = vdwg.mxu0
    %v1999 = vadd.f32 %v1774, %v1991
    %v2000 = vadd.f32 %v1775, %v1996
    %2001 = vst.msk [vmem:[#allocation8] sm:$0xff] %vm74, %v1999
    %2002 = vst.msk [vmem:[#allocation8 + $0x8] sm:$0xff] %vm74, %v2000
    // Predicated region
    $region46: #{tpu_custom_call.1} parent=1 // pred_check
      _
    $region47: #{tpu_custom_call.1} parent=1 // pred_check_branch
      %2004 = sbr.rel (0) target = $region49
    $region48: #{tpu_custom_call.1} parent=1 // pred_region
      %s2006 = ssub.s32 256, 256
      %2007 = vsyncadd [#allocation4], %s2006
      %s2008 = sshll.u32 [#allocation8], 4
      %s2009 = int_to_ptr.vmem [resolvable:$true] %s2008
      %2014 = dma.vmem_to_hbm [thread:$0]  %s2009, 256, %s8, [#allocation4], 128, 128, 8
    $region49: #{tpu_custom_call.1} parent=1 // pred_fallthru
      _
    // Predicated region
    $region50: #{tpu_custom_call.1} parent=1 // pred_check
      _
    $region51: #{tpu_custom_call.1} parent=1 // pred_check_branch
      %2016 = sbr.rel (0) target = $region53
    $region52: #{tpu_custom_call.1} parent=1 // pred_region
      %2017 = dma.done [#allocation4], 256
    $region53: #{tpu_custom_call.1} parent=1 // pred_fallthru
      _
    %2018 = vsyncpa [#allocation3], 1
    %2019 = vsyncpa [#allocation6], 1
    %2020 = vsyncpa [#allocation4], 1

</llo_original>
